<compile_context>
chip_gen: v6e
topology: v6e:2x2x1
jax: 0.10.0
libtpu: 0.0.40
codegen_flags: <defaults>
</compile_context>

<pallas_src>
import jax
import jax.numpy as jnp
from jax import lax
from jax.experimental import pallas as pl
from jax.experimental.pallas import tpu as pltpu

_HIDDEN = 128

# Auto-detected on first call: whether this JAX build accepts single-buffered
# (pl.Buffered(1)) constant weight operands.  None = not probed yet.
_WEIGHT_SINGLE_BUFFER_OK = None


def _round_up(x, m):
    return ((x + m - 1) // m) * m


def _make_mlp_encoder_kernel(latent_dim):
    def kernel(img_ref, lbl_ref, w1p_ref, w1l_ref, b1_ref,
               w2_ref, b2_ref, w3_ref, b3_ref, out_ref):
        # fc1 (pixel half + label half replaces torch.cat) + relu.
        # f32 accumulation regardless of the (possibly bf16) input/weight dtype.
        h = jnp.dot(img_ref[...], w1p_ref[...], preferred_element_type=jnp.float32)
        h = h + jnp.dot(lbl_ref[...], w1l_ref[...], preferred_element_type=jnp.float32)
        h = jnp.maximum(h + b1_ref[...], 0.0)
        # fc2 + relu (cast activations to the weight dtype -> single-pass MXU).
        h = jnp.dot(h.astype(w2_ref.dtype), w2_ref[...],
                    preferred_element_type=jnp.float32)
        h = jnp.maximum(h + b2_ref[...], 0.0)
        # fc3 -> lane-dense (TB, 128) tile; useful 2*latent_dim cols at the front.
        z = jnp.dot(h.astype(w3_ref.dtype), w3_ref[...],
                    preferred_element_type=jnp.float32)
        z = z + b3_ref[...]
        # exp() of the log-std lanes in-kernel: EUP slot is idle in this
        # mem-bound kernel and it saves a separate XLA elementwise pass plus an
        # extra (B, 128) HBM round trip.
        col = lax.broadcasted_iota(jnp.int32, z.shape, 1)
        std_mask = (col >= latent_dim) & (col < 2 * latent_dim)
        out_ref[...] = jnp.where(std_mask, jnp.exp(z), z)
    return kernel


def prepare_encoder_params(params, *, n_pixels, latent_dim,
                           compute_dtype=jnp.bfloat16):
    """One-time layout/dtype prep.

    * Splits fc1's weight into pixel/label halves (kernel-side replacement for
      the torch.cat on the dominant (B, 794) activation).
    * Zero-pads fc3's weight/bias to a 128-lane-dense output tile.
    * Casts weights to `compute_dtype` (bf16 default: ~4x MXU on v5e, ~2x less
      HBM traffic; pass jnp.float32 for bit-parity with nn.Linear).  Biases stay
      f32 since they are added after the f32 accumulation.
    """
    w1 = params["w1"]
    assert w1.shape[0] > n_pixels
    out_dim = 2 * latent_dim
    out_w = max(_HIDDEN, _round_up(out_dim, 128))  # lane-dense output width
    w3 = jnp.zeros((_HIDDEN, out_w), jnp.float32).at[:, :out_dim].set(params["w3"])
    b3 = jnp.zeros((1, out_w), jnp.float32).at[:, :out_dim].set(params["b3"])
    # TODO(synk): if the data pipeline can emit images zero-padded to 896 cols
    # (7*128 lanes), also pad w1_pix here; a wrapper-side pad would re-introduce
    # a full HBM copy of the dominant buffer, so it is intentionally not done.
    return {
        "w1_pix": w1[:n_pixels].astype(compute_dtype),
        "w1_lbl": w1[n_pixels:].astype(compute_dtype),
        "b1": params["b1"].astype(jnp.float32),
        "w2": params["w2"].astype(compute_dtype),
        "b2": params["b2"].astype(jnp.float32),
        "w3": w3.astype(compute_dtype),
        "b3": b3,
    }


def mlp_encoder_forward(image, one_hot_label, enc_params, *, latent_dim,
                        block_b=1024):
    """Pallas implementation of MLPEncoder.forward.

    image:         (B, slen, slen) float
    one_hot_label: (B, n_classes)  float
    enc_params:    output of prepare_encoder_params
    returns (latent_means (B, latent_dim), latent_std (B, latent_dim)), f32.
    """
    global _WEIGHT_SINGLE_BUFFER_OK

    B = image.shape[0]
    n_pixels = image.shape[1] * image.shape[2]
    n_classes = one_hot_label.shape[1]
    assert one_hot_label.shape[0] == B
    assert enc_params["w1_pix"].shape[0] == n_pixels
    assert enc_params["w1_lbl"].shape[0] == n_classes

    compute_dtype = enc_params["w1_pix"].dtype
    in_bytes = jnp.dtype(compute_dtype).itemsize

    # Image/label streams in the compute dtype (bf16 halves the dominant
    # (B, 784) HBM stream; ideally the data pipeline already produces bf16 so
    # this astype is a no-op).
    img = image.reshape(B, n_pixels).astype(compute_dtype)
    lbl = one_hot_label.astype(compute_dtype)

    out_dim = 2 * latent_dim
    out_w = enc_params["w3"].shape[1]

    # --- batch tile ----------------------------------------------------------
    # Large tile amortizes the ~0.35us/grid-step pipeline overhead.  For B > 256
    # force >= 2 grid steps so the "parallel" axis feeds both v7x TensorCores.
    tb = min(block_b, B)
    if B > 256 and pl.cdiv(B, tb) < 2:
        tb = _round_up(pl.cdiv(B, 2), 8)
    grid = (pl.cdiv(B, tb),)
    # NOTE: at B <= 256 (single grid step) this call is launch/latency bound;
    # fuse with the sampler/decoder or use plain XLA in that regime.

    # --- VMEM budget ---------------------------------------------------------
    # Double-buffered batch tiles + (conservatively double-buffered) weights.
    # Raise above v5e's 16 MiB scoped default; cap at 64 MiB (v7x physical).
    w_bytes = in_bytes * ((n_pixels + n_classes) * _HIDDEN
                          + _HIDDEN * _HIDDEN + _HIDDEN * out_w)
    b_bytes = 4 * (2 * _HIDDEN + out_w)
    tile_bytes = tb * (in_bytes * (n_pixels + n_classes) + 4 * out_w)
    vmem_limit = int(min(max(2 * tile_bytes + 2 * (w_bytes + b_bytes) + (2 << 20),
                             32 << 20), 64 << 20))

    flops = 2 * B * (n_pixels * _HIDDEN + n_classes * _HIDDEN
                     + _HIDDEN * _HIDDEN + _HIDDEN * out_w)
    bytes_accessed = (in_bytes * B * (n_pixels + n_classes) + 4 * B * out_w
                      + w_bytes + b_bytes)
    cost = pl.CostEstimate(flops=flops, transcendentals=B * out_w,
                           bytes_accessed=bytes_accessed)

    batch_map = lambda i: (i, 0)   # tiled over batch
    const_map = lambda i: (0, 0)   # VMEM-resident across grid steps

    kernel = _make_mlp_encoder_kernel(latent_dim)
    out_shape = jax.ShapeDtypeStruct((B, out_w), jnp.float32)
    operands = (img, lbl, enc_params["w1_pix"], enc_params["w1_lbl"],
                enc_params["b1"], enc_params["w2"], enc_params["b2"],
                enc_params["w3"], enc_params["b3"])

    def run(single_buffer_weights):
        if single_buffer_weights:
            # Constant index_map -> the block never changes; one buffer suffices
            # (frees ~0.5 MiB VMEM + removes redundant initial DMA issues).
            wspec = lambda shape: pl.BlockSpec(shape, const_map,
                                               pipeline_mode=pl.Buffered(1))
        else:
            wspec = lambda shape: pl.BlockSpec(shape, const_map)
        in_specs = [
            pl.BlockSpec((tb, n_pixels), batch_map),    # image
            pl.BlockSpec((tb, n_classes), batch_map),   # one-hot label
            wspec((n_pixels, _HIDDEN)),                 # w1_pix
            wspec((n_classes, _HIDDEN)),                # w1_lbl
            wspec((1, _HIDDEN)),                        # b1
            wspec((_HIDDEN, _HIDDEN)),                  # w2
            wspec((1, _HIDDEN)),                        # b2
            wspec((_HIDDEN, out_w)),                    # w3 (padded)
            wspec((1, out_w)),                          # b3 (padded)
        ]
        return pl.pallas_call(
            kernel,
            out_shape=out_shape,
            grid=grid,
            in_specs=in_specs,
            out_specs=pl.BlockSpec((tb, out_w), batch_map),
            compiler_params=pltpu.CompilerParams(
                dimension_semantics=("parallel",),
                vmem_limit_bytes=vmem_limit),
            cost_estimate=cost,
        )(*operands)

    if _WEIGHT_SINGLE_BUFFER_OK is None:
        try:
            h = jax.block_until_ready(run(True))
            _WEIGHT_SINGLE_BUFFER_OK = True
        except Exception:
            # Older JAX without pipeline_mode / Buffered(1): default buffering.
            _WEIGHT_SINGLE_BUFFER_OK = False
            h = run(False)
    else:
        h = run(_WEIGHT_SINGLE_BUFFER_OK)

    # exp() already applied in-kernel to the std lanes; just slice.
    latent_means = h[:, :latent_dim]
    latent_std = h[:, latent_dim:out_dim]
    return latent_means, latent_std


def init_params(key, n_pixels, n_classes, latent_dim, hidden=_HIDDEN):
    """Deterministic synthetic parameters (PyTorch nn.Linear-style uniform init)."""
    d_in = n_pixels + n_classes
    keys = jax.random.split(key, 6)

    def linear_init(kw, kb, fan_in, fan_out):
        bound = 1.0 / jnp.sqrt(fan_in)
        w = jax.random.uniform(kw, (fan_in, fan_out), jnp.float32, -bound, bound)
        b = jax.random.uniform(kb, (1, fan_out), jnp.float32, -bound, bound)
        return w, b

    w1, b1 = linear_init(keys[0], keys[1], d_in, hidden)
    w2, b2 = linear_init(keys[2], keys[3], hidden, hidden)
    w3, b3 = linear_init(keys[4], keys[5], hidden, 2 * latent_dim)
    return {"w1": w1, "b1": b1, "w2": w2, "b2": b2, "w3": w3, "b3": b3}


if __name__ == "__main__":
    latent_dim = 5
    slen = 28
    n_classes = 10
    n_pixels = slen * slen

    key = jax.random.PRNGKey(0)
    k_img, k_lbl, k_par, k_img2, k_lbl2 = jax.random.split(key, 5)

    params = init_params(k_par, n_pixels, n_classes, latent_dim)

    def reference(image, one_hot_label):
        b = image.shape[0]
        x = jnp.concatenate([image.reshape(b, n_pixels), one_hot_label], axis=1)
        h = jnp.maximum(x @ params["w1"] + params["b1"], 0.0)
        h = jnp.maximum(h @ params["w2"] + params["b2"], 0.0)
        h = h @ params["w3"] + params["b3"]
        return h[:, :latent_dim], jnp.exp(h[:, latent_dim:2 * latent_dim])

    # --- small batch, f32 compute path (tight tolerance) ----------------------
    batch = 2
    image = jax.random.uniform(k_img, (batch, slen, slen), jnp.float32)
    labels = jax.random.randint(k_lbl, (batch,), 0, n_classes)
    one_hot = jax.nn.one_hot(labels, n_classes, dtype=jnp.float32)

    enc_f32 = prepare_encoder_params(params, n_pixels=n_pixels,
                                     latent_dim=latent_dim,
                                     compute_dtype=jnp.float32)
    means, std = mlp_encoder_forward(image, one_hot, enc_f32,
                                     latent_dim=latent_dim)
    jax.block_until_ready((means, std))
    ref_means, ref_std = reference(image, one_hot)
    assert jnp.allclose(means, ref_means, atol=1e-5, rtol=1e-5)
    assert jnp.allclose(std, ref_std, atol=1e-5, rtol=1e-5)

    # --- default bf16 compute path (f32 accumulation), loose tolerance --------
    enc_bf16 = prepare_encoder_params(params, n_pixels=n_pixels,
                                      latent_dim=latent_dim)
    means_b, std_b = mlp_encoder_forward(image, one_hot, enc_bf16,
                                         latent_dim=latent_dim)
    jax.block_until_ready((means_b, std_b))
    assert jnp.allclose(means_b, ref_means, atol=3e-2, rtol=3e-2)
    assert jnp.allclose(std_b, ref_std, atol=3e-2, rtol=3e-2)

    # --- ragged multi-step grid (B not a multiple of the tile), f32 -----------
    batch2 = 36
    image2 = jax.random.uniform(k_img2, (batch2, slen, slen), jnp.float32)
    labels2 = jax.random.randint(k_lbl2, (batch2,), 0, n_classes)
    one_hot2 = jax.nn.one_hot(labels2, n_classes, dtype=jnp.float32)
    means2, std2 = mlp_encoder_forward(image2, one_hot2, enc_f32,
                                       latent_dim=latent_dim, block_b=16)
    jax.block_until_ready((means2, std2))
    ref_means2, ref_std2 = reference(image2, one_hot2)
    assert jnp.allclose(means2, ref_means2, atol=1e-5, rtol=1e-5)
    assert jnp.allclose(std2, ref_std2, atol=1e-5, rtol=1e-5)

    print("KERNEL_OK")
</pallas_src>

<mosaic_0001>
module attributes {stable_mosaic.version = 11 : i64} {
  func.func @kernel(%arg0: i32, %arg1: memref<2x784xf32, #tpu.memory_space<vmem>>, %arg2: memref<2x10xf32, #tpu.memory_space<vmem>>, %arg3: memref<784x128xf32, #tpu.memory_space<vmem>>, %arg4: memref<10x128xf32, #tpu.memory_space<vmem>>, %arg5: memref<1x128xf32, #tpu.memory_space<vmem>>, %arg6: memref<128x128xf32, #tpu.memory_space<vmem>>, %arg7: memref<1x128xf32, #tpu.memory_space<vmem>>, %arg8: memref<128x128xf32, #tpu.memory_space<vmem>>, %arg9: memref<1x128xf32, #tpu.memory_space<vmem>>, %arg10: memref<2x128xf32, #tpu.memory_space<vmem>>) attributes {dimension_semantics = [#tpu.dimension_semantics<parallel>], iteration_bounds = array<i64: 1>, scalar_prefetch = 0 : i64, scratch_operands = 0 : i64, tpu.core_type = #tpu.core_type<tc>, window_params = [{transform_indices = @transform_0, window_bounds = array<i64: 2, 784>}, {transform_indices = @transform_1, window_bounds = array<i64: 2, 10>}, {pipeline_mode = #tpu.pipeline_mode<synchronous>, transform_indices = @transform_2, window_bounds = array<i64: 784, 128>}, {pipeline_mode = #tpu.pipeline_mode<synchronous>, transform_indices = @transform_3, window_bounds = array<i64: 10, 128>}, {pipeline_mode = #tpu.pipeline_mode<synchronous>, transform_indices = @transform_4, window_bounds = array<i64: 1, 128>}, {pipeline_mode = #tpu.pipeline_mode<synchronous>, transform_indices = @transform_5, window_bounds = array<i64: 128, 128>}, {pipeline_mode = #tpu.pipeline_mode<synchronous>, transform_indices = @transform_6, window_bounds = array<i64: 1, 128>}, {pipeline_mode = #tpu.pipeline_mode<synchronous>, transform_indices = @transform_7, window_bounds = array<i64: 128, 128>}, {pipeline_mode = #tpu.pipeline_mode<synchronous>, transform_indices = @transform_8, window_bounds = array<i64: 1, 128>}, {transform_indices = @transform_9, window_bounds = array<i64: 2, 128>}]} {
    %c0 = arith.constant 0 : index
    %c0_0 = arith.constant 0 : index
    %0 = vector.load %arg1[%c0, %c0_0] : memref<2x784xf32, #tpu.memory_space<vmem>>, vector<2x784xf32>
    %c0_1 = arith.constant 0 : index
    %c0_2 = arith.constant 0 : index
    %1 = vector.load %arg3[%c0_1, %c0_2] : memref<784x128xf32, #tpu.memory_space<vmem>>, vector<784x128xf32>
    %cst = arith.constant dense<0.000000e+00> : vector<2x128xf32>
    %2 = tpu.matmul %0, %1, %cst {dimension_numbers = #tpu.dot_dimension_numbers<[1], [0], [0], [1], [0, 0, 1, 1], [], []>} : vector<2x784xf32>, vector<784x128xf32>, vector<2x128xf32> -> vector<2x128xf32>
    %c0_3 = arith.constant 0 : index
    %c0_4 = arith.constant 0 : index
    %3 = vector.load %arg2[%c0_3, %c0_4] : memref<2x10xf32, #tpu.memory_space<vmem>>, vector<2x10xf32>
    %c0_5 = arith.constant 0 : index
    %c0_6 = arith.constant 0 : index
    %4 = vector.load %arg4[%c0_5, %c0_6] : memref<10x128xf32, #tpu.memory_space<vmem>>, vector<10x128xf32>
    %cst_7 = arith.constant dense<0.000000e+00> : vector<2x128xf32>
    %5 = tpu.matmul %3, %4, %cst_7 {dimension_numbers = #tpu.dot_dimension_numbers<[1], [0], [0], [1], [0, 0, 1, 1], [], []>} : vector<2x10xf32>, vector<10x128xf32>, vector<2x128xf32> -> vector<2x128xf32>
    %6 = arith.addf %2, %5 : vector<2x128xf32>
    %c0_8 = arith.constant 0 : index
    %c0_9 = arith.constant 0 : index
    %7 = vector.load %arg5[%c0_8, %c0_9] : memref<1x128xf32, #tpu.memory_space<vmem>>, vector<1x128xf32>
    %8 = vector.broadcast %7 : vector<1x128xf32> to vector<2x128xf32>
    %9 = arith.addf %6, %8 : vector<2x128xf32>
    %cst_10 = arith.constant 0.000000e+00 : f32
    %10 = vector.broadcast %cst_10 : f32 to vector<2x128xf32>
    %11 = arith.maximumf %9, %10 : vector<2x128xf32>
    %c0_11 = arith.constant 0 : index
    %c0_12 = arith.constant 0 : index
    %12 = vector.load %arg6[%c0_11, %c0_12] : memref<128x128xf32, #tpu.memory_space<vmem>>, vector<128x128xf32>
    %cst_13 = arith.constant dense<0.000000e+00> : vector<2x128xf32>
    %13 = tpu.matmul %11, %12, %cst_13 {dimension_numbers = #tpu.dot_dimension_numbers<[1], [0], [0], [1], [0, 0, 1, 1], [], []>} : vector<2x128xf32>, vector<128x128xf32>, vector<2x128xf32> -> vector<2x128xf32>
    %c0_14 = arith.constant 0 : index
    %c0_15 = arith.constant 0 : index
    %14 = vector.load %arg7[%c0_14, %c0_15] : memref<1x128xf32, #tpu.memory_space<vmem>>, vector<1x128xf32>
    %15 = vector.broadcast %14 : vector<1x128xf32> to vector<2x128xf32>
    %16 = arith.addf %13, %15 : vector<2x128xf32>
    %cst_16 = arith.constant 0.000000e+00 : f32
    %17 = vector.broadcast %cst_16 : f32 to vector<2x128xf32>
    %18 = arith.maximumf %16, %17 : vector<2x128xf32>
    %c0_17 = arith.constant 0 : index
    %c0_18 = arith.constant 0 : index
    %19 = vector.load %arg8[%c0_17, %c0_18] : memref<128x128xf32, #tpu.memory_space<vmem>>, vector<128x128xf32>
    %cst_19 = arith.constant dense<0.000000e+00> : vector<2x128xf32>
    %20 = tpu.matmul %18, %19, %cst_19 {dimension_numbers = #tpu.dot_dimension_numbers<[1], [0], [0], [1], [0, 0, 1, 1], [], []>} : vector<2x128xf32>, vector<128x128xf32>, vector<2x128xf32> -> vector<2x128xf32>
    %c0_20 = arith.constant 0 : index
    %c0_21 = arith.constant 0 : index
    %21 = vector.load %arg9[%c0_20, %c0_21] : memref<1x128xf32, #tpu.memory_space<vmem>>, vector<1x128xf32>
    %22 = vector.broadcast %21 : vector<1x128xf32> to vector<2x128xf32>
    %23 = arith.addf %20, %22 : vector<2x128xf32>
    %24 = tpu.iota {dimensions = array<i32: 1>} : vector<2x128xi32>
    %c5_i32 = arith.constant 5 : i32
    %25 = vector.broadcast %c5_i32 : i32 to vector<2x128xi32>
    %26 = arith.cmpi sge, %24, %25 : vector<2x128xi32>
    %c10_i32 = arith.constant 10 : i32
    %27 = vector.broadcast %c10_i32 : i32 to vector<2x128xi32>
    %28 = arith.cmpi slt, %24, %27 : vector<2x128xi32>
    %29 = arith.andi %26, %28 : vector<2x128xi1>
    %30 = math.exp %23 : vector<2x128xf32>
    %31 = arith.select %29, %30, %23 : vector<2x128xi1>, vector<2x128xf32>
    %c0_22 = arith.constant 0 : index
    %c0_23 = arith.constant 0 : index
    %32 = vector.load %arg10[%c0_22, %c0_23] : memref<2x128xf32, #tpu.memory_space<vmem>>, vector<2x128xf32>
    tpu.vector_store %arg10[%c0_22, %c0_23], %31 {strides = array<i32>} : memref<2x128xf32, #tpu.memory_space<vmem>>, vector<2x128xf32>,
    return
  }
  func.func @transform_0(%arg0: i32) -> (i32, i32) {
    %c0_i32 = arith.constant 0 : i32
    %c0_i32_0 = arith.constant 0 : i32
    return %arg0, %c0_i32 : i32, i32
  }
  func.func @transform_1(%arg0: i32) -> (i32, i32) {
    %c0_i32 = arith.constant 0 : i32
    %c0_i32_0 = arith.constant 0 : i32
    return %arg0, %c0_i32 : i32, i32
  }
  func.func @transform_2(%arg0: i32) -> (i32, i32) {
    %c0_i32 = arith.constant 0 : i32
    %c0_i32_0 = arith.constant 0 : i32
    %c0_i32_1 = arith.constant 0 : i32
    return %c0_i32, %c0_i32_0 : i32, i32
  }
  func.func @transform_3(%arg0: i32) -> (i32, i32) {
    %c0_i32 = arith.constant 0 : i32
    %c0_i32_0 = arith.constant 0 : i32
    %c0_i32_1 = arith.constant 0 : i32
    return %c0_i32, %c0_i32_0 : i32, i32
  }
  func.func @transform_4(%arg0: i32) -> (i32, i32) {
    %c0_i32 = arith.constant 0 : i32
    %c0_i32_0 = arith.constant 0 : i32
    %c0_i32_1 = arith.constant 0 : i32
    return %c0_i32, %c0_i32_0 : i32, i32
  }
  func.func @transform_5(%arg0: i32) -> (i32, i32) {
    %c0_i32 = arith.constant 0 : i32
    %c0_i32_0 = arith.constant 0 : i32
    %c0_i32_1 = arith.constant 0 : i32
    return %c0_i32, %c0_i32_0 : i32, i32
  }
  func.func @transform_6(%arg0: i32) -> (i32, i32) {
    %c0_i32 = arith.constant 0 : i32
    %c0_i32_0 = arith.constant 0 : i32
    %c0_i32_1 = arith.constant 0 : i32
    return %c0_i32, %c0_i32_0 : i32, i32
  }
  func.func @transform_7(%arg0: i32) -> (i32, i32) {
    %c0_i32 = arith.constant 0 : i32
    %c0_i32_0 = arith.constant 0 : i32
    %c0_i32_1 = arith.constant 0 : i32
    return %c0_i32, %c0_i32_0 : i32, i32
  }
  func.func @transform_8(%arg0: i32) -> (i32, i32) {
    %c0_i32 = arith.constant 0 : i32
    %c0_i32_0 = arith.constant 0 : i32
    %c0_i32_1 = arith.constant 0 : i32
    return %c0_i32, %c0_i32_0 : i32, i32
  }
  func.func @transform_9(%arg0: i32) -> (i32, i32) {
    %c0_i32 = arith.constant 0 : i32
    %c0_i32_0 = arith.constant 0 : i32
    return %arg0, %c0_i32 : i32, i32
  }
}

module attributes {stable_mosaic.version = 11 : i64} {
  func.func @kernel(%arg0: i32, %arg1: memref<2x784xf32, #tpu.memory_space<vmem>>, %arg2: memref<2x10xf32, #tpu.memory_space<vmem>>, %arg3: memref<784x128xf32, #tpu.memory_space<vmem>>, %arg4: memref<10x128xf32, #tpu.memory_space<vmem>>, %arg5: memref<1x128xf32, #tpu.memory_space<vmem>>, %arg6: memref<128x128xf32, #tpu.memory_space<vmem>>, %arg7: memref<1x128xf32, #tpu.memory_space<vmem>>, %arg8: memref<128x128xf32, #tpu.memory_space<vmem>>, %arg9: memref<1x128xf32, #tpu.memory_space<vmem>>, %arg10: memref<2x128xf32, #tpu.memory_space<vmem>>) attributes {dimension_semantics = [#tpu.dimension_semantics<parallel>], iteration_bounds = array<i64: 1>, scalar_prefetch = 0 : i64, scratch_operands = 0 : i64, tpu.core_type = #tpu.core_type<tc>, window_params = [{transform_indices = @transform_0, window_bounds = array<i64: 2, 784>}, {transform_indices = @transform_1, window_bounds = array<i64: 2, 10>}, {pipeline_mode = #tpu.pipeline_mode<synchronous>, transform_indices = @transform_2, window_bounds = array<i64: 784, 128>}, {pipeline_mode = #tpu.pipeline_mode<synchronous>, transform_indices = @transform_3, window_bounds = array<i64: 10, 128>}, {pipeline_mode = #tpu.pipeline_mode<synchronous>, transform_indices = @transform_4, window_bounds = array<i64: 1, 128>}, {pipeline_mode = #tpu.pipeline_mode<synchronous>, transform_indices = @transform_5, window_bounds = array<i64: 128, 128>}, {pipeline_mode = #tpu.pipeline_mode<synchronous>, transform_indices = @transform_6, window_bounds = array<i64: 1, 128>}, {pipeline_mode = #tpu.pipeline_mode<synchronous>, transform_indices = @transform_7, window_bounds = array<i64: 128, 128>}, {pipeline_mode = #tpu.pipeline_mode<synchronous>, transform_indices = @transform_8, window_bounds = array<i64: 1, 128>}, {transform_indices = @transform_9, window_bounds = array<i64: 2, 128>}]} {
    %c0 = arith.constant 0 : index
    %c0_0 = arith.constant 0 : index
    %0 = vector.load %arg1[%c0, %c0_0] : memref<2x784xf32, #tpu.memory_space<vmem>>, vector<2x784xf32>
    %c0_1 = arith.constant 0 : index
    %c0_2 = arith.constant 0 : index
    %1 = vector.load %arg3[%c0_1, %c0_2] : memref<784x128xf32, #tpu.memory_space<vmem>>, vector<784x128xf32>
    %cst = arith.constant dense<0.000000e+00> : vector<2x128xf32>
    %2 = tpu.matmul %0, %1, %cst {dimension_numbers = #tpu.dot_dimension_numbers<[1], [0], [0], [1], [0, 0, 1, 1], [], []>} : vector<2x784xf32>, vector<784x128xf32>, vector<2x128xf32> -> vector<2x128xf32>
    %c0_3 = arith.constant 0 : index
    %c0_4 = arith.constant 0 : index
    %3 = vector.load %arg2[%c0_3, %c0_4] : memref<2x10xf32, #tpu.memory_space<vmem>>, vector<2x10xf32>
    %c0_5 = arith.constant 0 : index
    %c0_6 = arith.constant 0 : index
    %4 = vector.load %arg4[%c0_5, %c0_6] : memref<10x128xf32, #tpu.memory_space<vmem>>, vector<10x128xf32>
    %cst_7 = arith.constant dense<0.000000e+00> : vector<2x128xf32>
    %5 = tpu.matmul %3, %4, %cst_7 {dimension_numbers = #tpu.dot_dimension_numbers<[1], [0], [0], [1], [0, 0, 1, 1], [], []>} : vector<2x10xf32>, vector<10x128xf32>, vector<2x128xf32> -> vector<2x128xf32>
    %6 = arith.addf %2, %5 : vector<2x128xf32>
    %c0_8 = arith.constant 0 : index
    %c0_9 = arith.constant 0 : index
    %7 = vector.load %arg5[%c0_8, %c0_9] : memref<1x128xf32, #tpu.memory_space<vmem>>, vector<1x128xf32>
    %8 = vector.broadcast %7 : vector<1x128xf32> to vector<2x128xf32>
    %9 = arith.addf %6, %8 : vector<2x128xf32>
    %cst_10 = arith.constant 0.000000e+00 : f32
    %10 = vector.broadcast %cst_10 : f32 to vector<2x128xf32>
    %11 = arith.maximumf %9, %10 : vector<2x128xf32>
    %c0_11 = arith.constant 0 : index
    %c0_12 = arith.constant 0 : index
    %12 = vector.load %arg6[%c0_11, %c0_12] : memref<128x128xf32, #tpu.memory_space<vmem>>, vector<128x128xf32>
    %cst_13 = arith.constant dense<0.000000e+00> : vector<2x128xf32>
    %13 = tpu.matmul %11, %12, %cst_13 {dimension_numbers = #tpu.dot_dimension_numbers<[1], [0], [0], [1], [0, 0, 1, 1], [], []>} : vector<2x128xf32>, vector<128x128xf32>, vector<2x128xf32> -> vector<2x128xf32>
    %c0_14 = arith.constant 0 : index
    %c0_15 = arith.constant 0 : index
    %14 = vector.load %arg7[%c0_14, %c0_15] : memref<1x128xf32, #tpu.memory_space<vmem>>, vector<1x128xf32>
    %15 = vector.broadcast %14 : vector<1x128xf32> to vector<2x128xf32>
    %16 = arith.addf %13, %15 : vector<2x128xf32>
    %cst_16 = arith.constant 0.000000e+00 : f32
    %17 = vector.broadcast %cst_16 : f32 to vector<2x128xf32>
    %18 = arith.maximumf %16, %17 : vector<2x128xf32>
    %c0_17 = arith.constant 0 : index
    %c0_18 = arith.constant 0 : index
    %19 = vector.load %arg8[%c0_17, %c0_18] : memref<128x128xf32, #tpu.memory_space<vmem>>, vector<128x128xf32>
    %cst_19 = arith.constant dense<0.000000e+00> : vector<2x128xf32>
    %20 = tpu.matmul %18, %19, %cst_19 {dimension_numbers = #tpu.dot_dimension_numbers<[1], [0], [0], [1], [0, 0, 1, 1], [], []>} : vector<2x128xf32>, vector<128x128xf32>, vector<2x128xf32> -> vector<2x128xf32>
    %c0_20 = arith.constant 0 : index
    %c0_21 = arith.constant 0 : index
    %21 = vector.load %arg9[%c0_20, %c0_21] : memref<1x128xf32, #tpu.memory_space<vmem>>, vector<1x128xf32>
    %22 = vector.broadcast %21 : vector<1x128xf32> to vector<2x128xf32>
    %23 = arith.addf %20, %22 : vector<2x128xf32>
    %24 = tpu.iota {dimensions = array<i32: 1>} : vector<2x128xi32>
    %c5_i32 = arith.constant 5 : i32
    %25 = vector.broadcast %c5_i32 : i32 to vector<2x128xi32>
    %26 = arith.cmpi sge, %24, %25 : vector<2x128xi32>
    %c10_i32 = arith.constant 10 : i32
    %27 = vector.broadcast %c10_i32 : i32 to vector<2x128xi32>
    %28 = arith.cmpi slt, %24, %27 : vector<2x128xi32>
    %29 = arith.andi %26, %28 : vector<2x128xi1>
    %30 = math.exp %23 : vector<2x128xf32>
    %31 = arith.select %29, %30, %23 : vector<2x128xi1>, vector<2x128xf32>
    %c0_22 = arith.constant 0 : index
    %c0_23 = arith.constant 0 : index
    %32 = vector.load %arg10[%c0_22, %c0_23] : memref<2x128xf32, #tpu.memory_space<vmem>>, vector<2x128xf32>
    tpu.vector_store %arg10[%c0_22, %c0_23], %31 {strides = array<i32>} : memref<2x128xf32, #tpu.memory_space<vmem>>, vector<2x128xf32>,
    return
  }
  func.func @transform_0(%arg0: i32) -> (i32, i32) {
    %c0_i32 = arith.constant 0 : i32
    %c0_i32_0 = arith.constant 0 : i32
    return %arg0, %c0_i32 : i32, i32
  }
  func.func @transform_1(%arg0: i32) -> (i32, i32) {
    %c0_i32 = arith.constant 0 : i32
    %c0_i32_0 = arith.constant 0 : i32
    return %arg0, %c0_i32 : i32, i32
  }
  func.func @transform_2(%arg0: i32) -> (i32, i32) {
    %c0_i32 = arith.constant 0 : i32
    %c0_i32_0 = arith.constant 0 : i32
    %c0_i32_1 = arith.constant 0 : i32
    return %c0_i32, %c0_i32_0 : i32, i32
  }
  func.func @transform_3(%arg0: i32) -> (i32, i32) {
    %c0_i32 = arith.constant 0 : i32
    %c0_i32_0 = arith.constant 0 : i32
    %c0_i32_1 = arith.constant 0 : i32
    return %c0_i32, %c0_i32_0 : i32, i32
  }
  func.func @transform_4(%arg0: i32) -> (i32, i32) {
    %c0_i32 = arith.constant 0 : i32
    %c0_i32_0 = arith.constant 0 : i32
    %c0_i32_1 = arith.constant 0 : i32
    return %c0_i32, %c0_i32_0 : i32, i32
  }
  func.func @transform_5(%arg0: i32) -> (i32, i32) {
    %c0_i32 = arith.constant 0 : i32
    %c0_i32_0 = arith.constant 0 : i32
    %c0_i32_1 = arith.constant 0 : i32
    return %c0_i32, %c0_i32_0 : i32, i32
  }
  func.func @transform_6(%arg0: i32) -> (i32, i32) {
    %c0_i32 = arith.constant 0 : i32
    %c0_i32_0 = arith.constant 0 : i32
    %c0_i32_1 = arith.constant 0 : i32
    return %c0_i32, %c0_i32_0 : i32, i32
  }
  func.func @transform_7(%arg0: i32) -> (i32, i32) {
    %c0_i32 = arith.constant 0 : i32
    %c0_i32_0 = arith.constant 0 : i32
    %c0_i32_1 = arith.constant 0 : i32
    return %c0_i32, %c0_i32_0 : i32, i32
  }
  func.func @transform_8(%arg0: i32) -> (i32, i32) {
    %c0_i32 = arith.constant 0 : i32
    %c0_i32_0 = arith.constant 0 : i32
    %c0_i32_1 = arith.constant 0 : i32
    return %c0_i32, %c0_i32_0 : i32, i32
  }
  func.func @transform_9(%arg0: i32) -> (i32, i32) {
    %c0_i32 = arith.constant 0 : i32
    %c0_i32_0 = arith.constant 0 : i32
    return %arg0, %c0_i32 : i32, i32
  }
}

</mosaic_0001>

<llo_original>
// kernel: tpu_custom_call.1
$region0: #{tpu_custom_call.1}
  #allocation0 [shape = 'u32[]', space=smem, size = 0x4, offset = 0x4, fixed_abs, tag = 'smem constant byte address 0x4 - core index']
  #allocation1 [shape = 'u32[144,128]{1,0:T(1,128)}', space=vmem, size = 0x12000, scoped, tag = 'internal scratch']
  %s0 = inlined_call_operand.hbm [shape: f32[2,784], index: 0, kind: input, shape index: {}]
  %s1 = inlined_call_operand.hbm [shape: f32[2,10], index: 1, kind: input, shape index: {}]
  %s2 = inlined_call_operand.hbm [shape: f32[784,128], index: 2, kind: input, shape index: {}]
  %s3 = inlined_call_operand.hbm [shape: f32[10,128], index: 3, kind: input, shape index: {}]
  %s4 = inlined_call_operand.vmem [shape: f32[1,128], index: 4, kind: input, shape index: {}]
  %s5 = inlined_call_operand.hbm [shape: f32[128,128], index: 5, kind: input, shape index: {}]
  %s6 = inlined_call_operand.vmem [shape: f32[1,128], index: 6, kind: input, shape index: {}]
  %s7 = inlined_call_operand.hbm [shape: f32[128,128], index: 7, kind: input, shape index: {}]
  %s8 = inlined_call_operand.vmem [shape: f32[1,128], index: 8, kind: input, shape index: {}]
  %s9 = inlined_call_operand.hbm [shape: f32[2,128], index: 9, kind: output, shape index: {}]
  %s10 = sld [smem:[#allocation0]]
  $region70: #{tpu_custom_call.1} parent=0
    _
  %s12 = ssub.s32 1, %s10
  %s13 = scalar_select 0, %s12, %s10
  $region1: #{tpu_custom_call.1} parent=0
    #allocation2 [shape = 'u8[7168]{0}', space=vmem, size = 0x1c00, scoped, tag = 'input window, operand 0, single buffered']
    #allocation3 [shape = 's32[1]{0}', space=sflag, size = 0x4, scoped, tag = 'scoped memory for tpu_custom_call.1']
    #allocation4 [shape = 's32[1]{0}', space=sflag, size = 0x4, scoped, tag = 'scoped memory for tpu_custom_call.1']
    #allocation5 [shape = 'u8[1024]{0}', space=vmem, size = 0x400, scoped, tag = 'input window, operand 1, single buffered']
    #allocation6 [shape = 's32[1]{0}', space=sflag, size = 0x4, scoped, tag = 'scoped memory for tpu_custom_call.1']
    #allocation7 [shape = 'u8[401408]{0}', space=vmem, size = 0x62000, scoped, tag = 'input window, operand 2, single buffered']
    #allocation8 [shape = 'u8[8192]{0}', space=vmem, size = 0x2000, scoped, tag = 'input window, operand 3, single buffered']
    #allocation9 [shape = 's32[1]{0}', space=sflag, size = 0x4, scoped, tag = 'scoped memory for tpu_custom_call.1']
    #allocation10 [shape = 'u8[65536]{0}', space=vmem, size = 0x10000, scoped, tag = 'input window, operand 5, single buffered']
    #allocation11 [shape = 'u8[65536]{0}', space=vmem, size = 0x10000, scoped, tag = 'input window, operand 7, single buffered']
    #allocation12 [shape = 's32[1]{0}', space=sflag, size = 0x4, scoped, tag = 'scoped memory for tpu_custom_call.1']
    #allocation13 [shape = 'u8[1024]{0}', space=vmem, size = 0x400, scoped, tag = 'output window, operand 0, single buffered']
    %14 = vsyncpa [#allocation3], 0
    %15 = vsyncpa [#allocation6], 0
    %16 = vsyncpa [#allocation9], 0
    %17 = vsyncpa [#allocation12], 0
    %18 = vsyncpa [#allocation4], 0
    // Predicated region
    $region2: #{tpu_custom_call.1} parent=1 // pred_check
      _
    $region3: #{tpu_custom_call.1} parent=1 // pred_check_branch
      %20 = sbr.rel (0) target = $region5
    $region4: #{tpu_custom_call.1} parent=1 // pred_region
      %s22 = ssub.s32 224, 224
      %23 = vsyncadd [#allocation3], %s22
      %s25 = sshll.u32 [#allocation2], 4
      %s26 = int_to_ptr.vmem [resolvable:$true] %s25
      %28 = dma.hbm_to_vmem [thread:$0]  %s0, 224, %s26, [#allocation3]
    $region5: #{tpu_custom_call.1} parent=1 // pred_fallthru
      _
    // Predicated region
    $region6: #{tpu_custom_call.1} parent=1 // pred_check
      _
    $region7: #{tpu_custom_call.1} parent=1 // pred_check_branch
      %30 = sbr.rel (0) target = $region9
    $region8: #{tpu_custom_call.1} parent=1 // pred_region
      %s32 = ssub.s32 32, 32
      %33 = vsyncadd [#allocation6], %s32
      %s35 = sshll.u32 [#allocation5], 4
      %s36 = int_to_ptr.vmem [resolvable:$true] %s35
      %38 = dma.hbm_to_vmem [thread:$0]  %s1, 32, %s36, [#allocation6]
    $region9: #{tpu_custom_call.1} parent=1 // pred_fallthru
      _
    // Predicated region
    $region10: #{tpu_custom_call.1} parent=1 // pred_check
      _
    $region11: #{tpu_custom_call.1} parent=1 // pred_check_branch
      %40 = sbr.rel (0) target = $region13
    $region12: #{tpu_custom_call.1} parent=1 // pred_region
      %s42 = ssub.s32 12544, 12544
      %43 = vsyncadd [#allocation6], %s42
      %s44 = sshll.u32 [#allocation7], 4
      %s45 = int_to_ptr.vmem [resolvable:$true] %s44
      %50 = dma.hbm_to_vmem [thread:$0]  %s2, 12544, %s45, [#allocation6], 128, 128, 8
    $region13: #{tpu_custom_call.1} parent=1 // pred_fallthru
      _
    // Predicated region
    $region14: #{tpu_custom_call.1} parent=1 // pred_check
      _
    $region15: #{tpu_custom_call.1} parent=1 // pred_check_branch
      %52 = sbr.rel (0) target = $region17
    $region16: #{tpu_custom_call.1} parent=1 // pred_region
      %s54 = ssub.s32 256, 256
      %55 = vsyncadd [#allocation9], %s54
      %s56 = sshll.u32 [#allocation8], 4
      %s57 = int_to_ptr.vmem [resolvable:$true] %s56
      %62 = dma.hbm_to_vmem [thread:$0]  %s3, 256, %s57, [#allocation9], 128, 128, 8
    $region17: #{tpu_custom_call.1} parent=1 // pred_fallthru
      _
    // Predicated region
    $region18: #{tpu_custom_call.1} parent=1 // pred_check
      _
    $region19: #{tpu_custom_call.1} parent=1 // pred_check_branch
      %64 = sbr.rel (0) target = $region21
    $region20: #{tpu_custom_call.1} parent=1 // pred_region
      _
    $region21: #{tpu_custom_call.1} parent=1 // pred_fallthru
      _
    // Predicated region
    $region22: #{tpu_custom_call.1} parent=1 // pred_check
      _
    $region23: #{tpu_custom_call.1} parent=1 // pred_check_branch
      %66 = sbr.rel (0) target = $region25
    $region24: #{tpu_custom_call.1} parent=1 // pred_region
      %s68 = ssub.s32 2048, 2048
      %69 = vsyncadd [#allocation9], %s68
      %s70 = sshll.u32 [#allocation10], 4
      %s71 = int_to_ptr.vmem [resolvable:$true] %s70
      %76 = dma.hbm_to_vmem [thread:$0]  %s5, 2048, %s71, [#allocation9], 128, 128, 8
    $region25: #{tpu_custom_call.1} parent=1 // pred_fallthru
      _
    // Predicated region
    $region26: #{tpu_custom_call.1} parent=1 // pred_check
      _
    $region27: #{tpu_custom_call.1} parent=1 // pred_check_branch
      %78 = sbr.rel (0) target = $region29
    $region28: #{tpu_custom_call.1} parent=1 // pred_region
      _
    $region29: #{tpu_custom_call.1} parent=1 // pred_fallthru
      _
    // Predicated region
    $region30: #{tpu_custom_call.1} parent=1 // pred_check
      _
    $region31: #{tpu_custom_call.1} parent=1 // pred_check_branch
      %80 = sbr.rel (0) target = $region33
    $region32: #{tpu_custom_call.1} parent=1 // pred_region
      %s82 = ssub.s32 2048, 2048
      %83 = vsyncadd [#allocation12], %s82
      %s84 = sshll.u32 [#allocation11], 4
      %s85 = int_to_ptr.vmem [resolvable:$true] %s84
      %90 = dma.hbm_to_vmem [thread:$0]  %s7, 2048, %s85, [#allocation12], 128, 128, 8
    $region33: #{tpu_custom_call.1} parent=1 // pred_fallthru
      _
    // Predicated region
    $region34: #{tpu_custom_call.1} parent=1 // pred_check
      _
    $region35: #{tpu_custom_call.1} parent=1 // pred_check_branch
      %92 = sbr.rel (0) target = $region37
    $region36: #{tpu_custom_call.1} parent=1 // pred_region
      _
    $region37: #{tpu_custom_call.1} parent=1 // pred_fallthru
      _
    // Predicated region
    $region38: #{tpu_custom_call.1} parent=1 // pred_check
      _
    $region39: #{tpu_custom_call.1} parent=1 // pred_check_branch
      %94 = sbr.rel (0) target = $region41
    $region40: #{tpu_custom_call.1} parent=1 // pred_region
      %95 = dma.done [#allocation3], 224
    $region41: #{tpu_custom_call.1} parent=1 // pred_fallthru
      _
    // Predicated region
    $region42: #{tpu_custom_call.1} parent=1 // pred_check
      _
    $region43: #{tpu_custom_call.1} parent=1 // pred_check_branch
      %97 = sbr.rel (0) target = $region45
    $region44: #{tpu_custom_call.1} parent=1 // pred_region
      %98 = dma.done [#allocation6], 32
    $region45: #{tpu_custom_call.1} parent=1 // pred_fallthru
      _
    // Predicated region
    $region46: #{tpu_custom_call.1} parent=1 // pred_check
      _
    $region47: #{tpu_custom_call.1} parent=1 // pred_check_branch
      %100 = sbr.rel (0) target = $region49
    $region48: #{tpu_custom_call.1} parent=1 // pred_region
      %101 = dma.done [#allocation6], 12544
    $region49: #{tpu_custom_call.1} parent=1 // pred_fallthru
      _
    // Predicated region
    $region50: #{tpu_custom_call.1} parent=1 // pred_check
      _
    $region51: #{tpu_custom_call.1} parent=1 // pred_check_branch
      %103 = sbr.rel (0) target = $region53
    $region52: #{tpu_custom_call.1} parent=1 // pred_region
      %104 = dma.done [#allocation9], 256
    $region53: #{tpu_custom_call.1} parent=1 // pred_fallthru
      _
    // Predicated region
    $region54: #{tpu_custom_call.1} parent=1 // pred_check
      _
    $region55: #{tpu_custom_call.1} parent=1 // pred_check_branch
      %106 = sbr.rel (0) target = $region57
    $region56: #{tpu_custom_call.1} parent=1 // pred_region
      %107 = dma.done [#allocation9], 2048
    $region57: #{tpu_custom_call.1} parent=1 // pred_fallthru
      _
    // Predicated region
    $region58: #{tpu_custom_call.1} parent=1 // pred_check
      _
    $region59: #{tpu_custom_call.1} parent=1 // pred_check_branch
      %109 = sbr.rel (0) target = $region61
    $region60: #{tpu_custom_call.1} parent=1 // pred_region
      %110 = dma.done [#allocation12], 2048
    $region61: #{tpu_custom_call.1} parent=1 // pred_fallthru
      _
    %v111 = vld [vmem:[#allocation2] sm:$0xff]
    %v112 = vld [vmem:[#allocation2 + $0x8] sm:$0x3f]
    %v113 = vld [vmem:[#allocation7] sm:$0xff]
    %v114 = vld [vmem:[#allocation7 + $0x8] sm:$0xff]
    %v115 = vld [vmem:[#allocation7 + $0x10] sm:$0xff]
    %v116 = vld [vmem:[#allocation7 + $0x18] sm:$0xff]
    %v117 = vld [vmem:[#allocation7 + $0x20] sm:$0xff]
    %v118 = vld [vmem:[#allocation7 + $0x28] sm:$0xff]
    %v119 = vld [vmem:[#allocation7 + $0x30] sm:$0xff]
    %v120 = vld [vmem:[#allocation7 + $0x38] sm:$0xff]
    %v121 = vld [vmem:[#allocation7 + $0x40] sm:$0xff]
    %v122 = vld [vmem:[#allocation7 + $0x48] sm:$0xff]
    %v123 = vld [vmem:[#allocation7 + $0x50] sm:$0xff]
    %v124 = vld [vmem:[#allocation7 + $0x58] sm:$0xff]
    %v125 = vld [vmem:[#allocation7 + $0x60] sm:$0xff]
    %v126 = vld [vmem:[#allocation7 + $0x68] sm:$0xff]
    %v127 = vld [vmem:[#allocation7 + $0x70] sm:$0xff]
    %v128 = vld [vmem:[#allocation7 + $0x78] sm:$0xff]
    %v129 = vld [vmem:[#allocation7 + $0x80] sm:$0xff]
    %v130 = vld [vmem:[#allocation7 + $0x88] sm:$0xff]
    %v131 = vld [vmem:[#allocation7 + $0x90] sm:$0xff]
    %v132 = vld [vmem:[#allocation7 + $0x98] sm:$0xff]
    %v133 = vld [vmem:[#allocation7 + $0xa0] sm:$0xff]
    %v134 = vld [vmem:[#allocation7 + $0xa8] sm:$0xff]
    %v135 = vld [vmem:[#allocation7 + $0xb0] sm:$0xff]
    %v136 = vld [vmem:[#allocation7 + $0xb8] sm:$0xff]
    %v137 = vld [vmem:[#allocation7 + $0xc0] sm:$0xff]
    %v138 = vld [vmem:[#allocation7 + $0xc8] sm:$0xff]
    %v139 = vld [vmem:[#allocation7 + $0xd0] sm:$0xff]
    %v140 = vld [vmem:[#allocation7 + $0xd8] sm:$0xff]
    %v141 = vld [vmem:[#allocation7 + $0xe0] sm:$0xff]
    %v142 = vld [vmem:[#allocation7 + $0xe8] sm:$0xff]
    %v143 = vld [vmem:[#allocation7 + $0xf0] sm:$0xff]
    %v144 = vld [vmem:[#allocation7 + $0xf8] sm:$0xff]
    %v145 = vld [vmem:[#allocation7 + $0x100] sm:$0xff]
    %v146 = vld [vmem:[#allocation7 + $0x108] sm:$0xff]
    %v147 = vld [vmem:[#allocation7 + $0x110] sm:$0xff]
    %v148 = vld [vmem:[#allocation7 + $0x118] sm:$0xff]
    %v149 = vld [vmem:[#allocation7 + $0x120] sm:$0xff]
    %v150 = vld [vmem:[#allocation7 + $0x128] sm:$0xff]
    %v151 = vld [vmem:[#allocation7 + $0x130] sm:$0xff]
    %v152 = vld [vmem:[#allocation7 + $0x138] sm:$0xff]
    %v153 = vld [vmem:[#allocation7 + $0x140] sm:$0xff]
    %v154 = vld [vmem:[#allocation7 + $0x148] sm:$0xff]
    %v155 = vld [vmem:[#allocation7 + $0x150] sm:$0xff]
    %v156 = vld [vmem:[#allocation7 + $0x158] sm:$0xff]
    %v157 = vld [vmem:[#allocation7 + $0x160] sm:$0xff]
    %v158 = vld [vmem:[#allocation7 + $0x168] sm:$0xff]
    %v159 = vld [vmem:[#allocation7 + $0x170] sm:$0xff]
    %v160 = vld [vmem:[#allocation7 + $0x178] sm:$0xff]
    %v161 = vld [vmem:[#allocation7 + $0x180] sm:$0xff]
    %v162 = vld [vmem:[#allocation7 + $0x188] sm:$0xff]
    %v163 = vld [vmem:[#allocation7 + $0x190] sm:$0xff]
    %v164 = vld [vmem:[#allocation7 + $0x198] sm:$0xff]
    %v165 = vld [vmem:[#allocation7 + $0x1a0] sm:$0xff]
    %v166 = vld [vmem:[#allocation7 + $0x1a8] sm:$0xff]
    %v167 = vld [vmem:[#allocation7 + $0x1b0] sm:$0xff]
    %v168 = vld [vmem:[#allocation7 + $0x1b8] sm:$0xff]
    %v169 = vld [vmem:[#allocation7 + $0x1c0] sm:$0xff]
    %v170 = vld [vmem:[#allocation7 + $0x1c8] sm:$0xff]
    %v171 = vld [vmem:[#allocation7 + $0x1d0] sm:$0xff]
    %v172 = vld [vmem:[#allocation7 + $0x1d8] sm:$0xff]
    %v173 = vld [vmem:[#allocation7 + $0x1e0] sm:$0xff]
    %v174 = vld [vmem:[#allocation7 + $0x1e8] sm:$0xff]
    %v175 = vld [vmem:[#allocation7 + $0x1f0] sm:$0xff]
    %v176 = vld [vmem:[#allocation7 + $0x1f8] sm:$0xff]
    %v177 = vld [vmem:[#allocation7 + $0x200] sm:$0xff]
    %v178 = vld [vmem:[#allocation7 + $0x208] sm:$0xff]
    %v179 = vld [vmem:[#allocation7 + $0x210] sm:$0xff]
    %v180 = vld [vmem:[#allocation7 + $0x218] sm:$0xff]
    %v181 = vld [vmem:[#allocation7 + $0x220] sm:$0xff]
    %v182 = vld [vmem:[#allocation7 + $0x228] sm:$0xff]
    %v183 = vld [vmem:[#allocation7 + $0x230] sm:$0xff]
    %v184 = vld [vmem:[#allocation7 + $0x238] sm:$0xff]
    %v185 = vld [vmem:[#allocation7 + $0x240] sm:$0xff]
    %v186 = vld [vmem:[#allocation7 + $0x248] sm:$0xff]
    %v187 = vld [vmem:[#allocation7 + $0x250] sm:$0xff]
    %v188 = vld [vmem:[#allocation7 + $0x258] sm:$0xff]
    %v189 = vld [vmem:[#allocation7 + $0x260] sm:$0xff]
    %v190 = vld [vmem:[#allocation7 + $0x268] sm:$0xff]
    %v191 = vld [vmem:[#allocation7 + $0x270] sm:$0xff]
    %v192 = vld [vmem:[#allocation7 + $0x278] sm:$0xff]
    %v193 = vld [vmem:[#allocation7 + $0x280] sm:$0xff]
    %v194 = vld [vmem:[#allocation7 + $0x288] sm:$0xff]
    %v195 = vld [vmem:[#allocation7 + $0x290] sm:$0xff]
    %v196 = vld [vmem:[#allocation7 + $0x298] sm:$0xff]
    %v197 = vld [vmem:[#allocation7 + $0x2a0] sm:$0xff]
    %v198 = vld [vmem:[#allocation7 + $0x2a8] sm:$0xff]
    %v199 = vld [vmem:[#allocation7 + $0x2b0] sm:$0xff]
    %v200 = vld [vmem:[#allocation7 + $0x2b8] sm:$0xff]
    %v201 = vld [vmem:[#allocation7 + $0x2c0] sm:$0xff]
    %v202 = vld [vmem:[#allocation7 + $0x2c8] sm:$0xff]
    %v203 = vld [vmem:[#allocation7 + $0x2d0] sm:$0xff]
    %v204 = vld [vmem:[#allocation7 + $0x2d8] sm:$0xff]
    %v205 = vld [vmem:[#allocation7 + $0x2e0] sm:$0xff]
    %v206 = vld [vmem:[#allocation7 + $0x2e8] sm:$0xff]
    %v207 = vld [vmem:[#allocation7 + $0x2f0] sm:$0xff]
    %v208 = vld [vmem:[#allocation7 + $0x2f8] sm:$0xff]
    %v209 = vld [vmem:[#allocation7 + $0x300] sm:$0xff]
    %v210 = vld [vmem:[#allocation7 + $0x308] sm:$0xff]
    %v211 = vld [vmem:[#allocation5] sm:$0x3]
    %v212 = vld [vmem:[#allocation8] sm:$0xff]
    %v213 = vld [vmem:[#allocation8 + $0x8] sm:$0x3]
    %vm214 = vcmask 80896
    %v216 = vsel %vm214, %v211, 0
    %vm218 = vcmask 1041408
    %v220 = vsel %vm218, %v213, 0
    %222 = vmatprep.subr.mxu0 0.0
    %223 = vmatpush1.msra.mxu0 0.0
    %224 = vmatprep.subr.mxu0 0.0
    %225 = vmatpush1.msra.mxu0 0.0
    %226 = vmatprep.subr.mxu0 0.0
    %227 = vmatpush1.msra.mxu0 0.0
    %228 = vmatprep.subr.mxu0 0.0
    %229 = vmatpush1.msra.mxu0 0.0
    %230 = vmatprep.subr.mxu0 0.0
    %231 = vmatpush1.msra.mxu0 0.0
    %232 = vmatprep.subr.mxu0 0.0
    %233 = vmatpush1.msra.mxu0 0.0
    %234 = vmatprep.subr.mxu0 0.0
    %235 = vmatpush1.msra.mxu0 0.0
    %236 = vmatprep.subr.mxu0 0.0
    %237 = vmatpush1.msra.mxu0 0.0
    %238 = vmatprep.subr.mxu0 0.0
    %239 = vmatpush1.msra.mxu0 0.0
    %240 = vmatprep.subr.mxu0 0.0
    %241 = vmatpush1.msra.mxu0 0.0
    %242 = vmatprep.subr.mxu0 0.0
    %243 = vmatpush1.msra.mxu0 0.0
    %244 = vmatprep.subr.mxu0 0.0
    %245 = vmatpush1.msra.mxu0 0.0
    %246 = vmatprep.subr.mxu0 0.0
    %247 = vmatpush1.msra.mxu0 0.0
    %248 = vmatprep.subr.mxu0 0.0
    %249 = vmatpush1.msra.mxu0 0.0
    %250 = vmatprep.subr.mxu0 0.0
    %251 = vmatpush1.msra.mxu0 %v220
    %252 = vmatprep.subr.mxu0 0.0
    %253 = vmatpush1.msra.mxu0 %v212
    %254 = vmatprep.subr.mxu0 0.0
    %255 = vmatpush2.msra.mxu0 0.0
    %256 = vmatprep.subr.mxu0 0.0
    %257 = vmatpush2.msra.mxu0 0.0
    %258 = vmatprep.subr.mxu0 0.0
    %259 = vmatpush2.msra.mxu0 0.0
    %260 = vmatprep.subr.mxu0 0.0
    %261 = vmatpush2.msra.mxu0 0.0
    %262 = vmatprep.subr.mxu0 0.0
    %263 = vmatpush2.msra.mxu0 0.0
    %264 = vmatprep.subr.mxu0 0.0
    %265 = vmatpush2.msra.mxu0 0.0
    %266 = vmatprep.subr.mxu0 0.0
    %267 = vmatpush2.msra.mxu0 0.0
    %268 = vmatprep.subr.mxu0 0.0
    %269 = vmatpush2.msra.mxu0 0.0
    %270 = vmatprep.subr.mxu0 0.0
    %271 = vmatpush2.msra.mxu0 0.0
    %272 = vmatprep.subr.mxu0 0.0
    %273 = vmatpush2.msra.mxu0 0.0
    %274 = vmatprep.subr.mxu0 0.0
    %275 = vmatpush2.msra.mxu0 0.0
    %276 = vmatprep.subr.mxu0 0.0
    %277 = vmatpush2.msra.mxu0 0.0
    %278 = vmatprep.subr.mxu0 0.0
    %279 = vmatpush2.msra.mxu0 0.0
    %280 = vmatprep.subr.mxu0 0.0
    %281 = vmatpush2.msra.mxu0 0.0
    %282 = vmatprep.subr.mxu0 0.0
    %283 = vmatpush2.msra.mxu0 0.0
    %284 = vmatprep.subr.mxu0 0.0
    %285 = vmatpush2.msra.mxu0 0.0
    %286 = vmatprep.mubr.f32.mxu0 0.0
    %287 = vmatmul.mubr.f32.gmra.mxu0 %v216
    %v288 = vpop.f32.mrf.mxu0
    %v289 = vadd.f32 0.0, %v288
    %v290 = vpop.f32.mrf.mxu0
    %291 = vdwg.mxu0
    %v294 = vcombine.high %v111, %v111
    %v296 = vunpack.c.l.s4 1983009808
    %v297 = vunpack.c.0.s8 %v296
    %v298 = vlaneseq
    %v299 = vshrl.u32 %v298, 7
    %v300 = vsub.s32 %v297, %v299
    %v301 = vrot.slane %v111, %v300
    %v303 = vunpack.c.l.s4 1983009808
    %v304 = vunpack.c.0.s8 %v303
    %v305 = vlaneseq
    %v306 = vshrl.u32 %v305, 7
    %v307 = vsub.s32 %v304, %v306
    %v308 = vrot.slane %v294, %v307
    %v309 = vcombine.high %v301, %v301
    %v310 = vcombine.high %v308, %v308
    %v311 = vcombine.high %v112, %v112
    %v313 = vunpack.c.l.s4 1983009808
    %v314 = vunpack.c.0.s8 %v313
    %v315 = vlaneseq
    %v316 = vshrl.u32 %v315, 7
    %v317 = vsub.s32 %v314, %v316
    %v318 = vrot.slane %v112, %v317
    %v320 = vunpack.c.l.s4 1983009808
    %v321 = vunpack.c.0.s8 %v320
    %v322 = vlaneseq
    %v323 = vshrl.u32 %v322, 7
    %v324 = vsub.s32 %v321, %v323
    %v325 = vrot.slane %v311, %v324
    %v326 = vcombine.high %v318, %v318
    %vm333 = vcmask 130048
    %v334 = vsel %vm333, %v325, 0
    %336 = vmatprep.subr.mxu0 0.0
    %337 = vmatpush1.msra.mxu0 %v128
    %338 = vmatprep.subr.mxu0 0.0
    %339 = vmatpush1.msra.mxu0 %v127
    %340 = vmatprep.subr.mxu0 0.0
    %341 = vmatpush1.msra.mxu0 %v126
    %342 = vmatprep.subr.mxu0 0.0
    %343 = vmatpush1.msra.mxu0 %v125
    %344 = vmatprep.subr.mxu0 0.0
    %345 = vmatpush1.msra.mxu0 %v124
    %346 = vmatprep.subr.mxu0 0.0
    %347 = vmatpush1.msra.mxu0 %v123
    %348 = vmatprep.subr.mxu0 0.0
    %349 = vmatpush1.msra.mxu0 %v122
    %350 = vmatprep.subr.mxu0 0.0
    %351 = vmatpush1.msra.mxu0 %v121
    %352 = vmatprep.subr.mxu0 0.0
    %353 = vmatpush1.msra.mxu0 %v120
    %354 = vmatprep.subr.mxu0 0.0
    %355 = vmatpush1.msra.mxu0 %v119
    %356 = vmatprep.subr.mxu0 0.0
    %357 = vmatpush1.msra.mxu0 %v118
    %358 = vmatprep.subr.mxu0 0.0
    %359 = vmatpush1.msra.mxu0 %v117
    %360 = vmatprep.subr.mxu0 0.0
    %361 = vmatpush1.msra.mxu0 %v116
    %362 = vmatprep.subr.mxu0 0.0
    %363 = vmatpush1.msra.mxu0 %v115
    %364 = vmatprep.subr.mxu0 0.0
    %365 = vmatpush1.msra.mxu0 %v114
    %366 = vmatprep.subr.mxu0 0.0
    %367 = vmatpush1.msra.mxu0 %v113
    %368 = vmatprep.subr.mxu0 0.0
    %369 = vmatpush2.msra.mxu0 %v144
    %370 = vmatprep.subr.mxu0 0.0
    %371 = vmatpush2.msra.mxu0 %v143
    %372 = vmatprep.subr.mxu0 0.0
    %373 = vmatpush2.msra.mxu0 %v142
    %374 = vmatprep.subr.mxu0 0.0
    %375 = vmatpush2.msra.mxu0 %v141
    %376 = vmatprep.subr.mxu0 0.0
    %377 = vmatpush2.msra.mxu0 %v140
    %378 = vmatprep.subr.mxu0 0.0
    %379 = vmatpush2.msra.mxu0 %v139
    %380 = vmatprep.subr.mxu0 0.0
    %381 = vmatpush2.msra.mxu0 %v138
    %382 = vmatprep.subr.mxu0 0.0
    %383 = vmatpush2.msra.mxu0 %v137
    %384 = vmatprep.subr.mxu0 0.0
    %385 = vmatpush2.msra.mxu0 %v136
    %386 = vmatprep.subr.mxu0 0.0
    %387 = vmatpush2.msra.mxu0 %v135
    %388 = vmatprep.subr.mxu0 0.0
    %389 = vmatpush2.msra.mxu0 %v134
    %390 = vmatprep.subr.mxu0 0.0
    %391 = vmatpush2.msra.mxu0 %v133
    %392 = vmatprep.subr.mxu0 0.0
    %393 = vmatpush2.msra.mxu0 %v132
    %394 = vmatprep.subr.mxu0 0.0
    %395 = vmatpush2.msra.mxu0 %v131
    %396 = vmatprep.subr.mxu0 0.0
    %397 = vmatpush2.msra.mxu0 %v130
    %398 = vmatprep.subr.mxu0 0.0
    %399 = vmatpush2.msra.mxu0 %v129
    %400 = vmatprep.mubr.f32.mxu0 %v309
    %401 = vmatmul.mubr.f32.gmra.mxu0 %v301
    %v402 = vpop.f32.mrf.mxu0
    %v403 = vadd.f32 %v289, %v402
    %v404 = vpop.f32.mrf.mxu0
    %405 = vdwg.mxu0
    %406 = vmatprep.subr.mxu0 0.0
    %407 = vmatpush1.msra.mxu0 %v160
    %408 = vmatprep.subr.mxu0 0.0
    %409 = vmatpush1.msra.mxu0 %v159
    %410 = vmatprep.subr.mxu0 0.0
    %411 = vmatpush1.msra.mxu0 %v158
    %412 = vmatprep.subr.mxu0 0.0
    %413 = vmatpush1.msra.mxu0 %v157
    %414 = vmatprep.subr.mxu0 0.0
    %415 = vmatpush1.msra.mxu0 %v156
    %416 = vmatprep.subr.mxu0 0.0
    %417 = vmatpush1.msra.mxu0 %v155
    %418 = vmatprep.subr.mxu0 0.0
    %419 = vmatpush1.msra.mxu0 %v154
    %420 = vmatprep.subr.mxu0 0.0
    %421 = vmatpush1.msra.mxu0 %v153
    %422 = vmatprep.subr.mxu0 0.0
    %423 = vmatpush1.msra.mxu0 %v152
    %424 = vmatprep.subr.mxu0 0.0
    %425 = vmatpush1.msra.mxu0 %v151
    %426 = vmatprep.subr.mxu0 0.0
    %427 = vmatpush1.msra.mxu0 %v150
    %428 = vmatprep.subr.mxu0 0.0
    %429 = vmatpush1.msra.mxu0 %v149
    %430 = vmatprep.subr.mxu0 0.0
    %431 = vmatpush1.msra.mxu0 %v148
    %432 = vmatprep.subr.mxu0 0.0
    %433 = vmatpush1.msra.mxu0 %v147
    %434 = vmatprep.subr.mxu0 0.0
    %435 = vmatpush1.msra.mxu0 %v146
    %436 = vmatprep.subr.mxu0 0.0
    %437 = vmatpush1.msra.mxu0 %v145
    %438 = vmatprep.subr.mxu0 0.0
    %439 = vmatpush2.msra.mxu0 %v176
    %440 = vmatprep.subr.mxu0 0.0
    %441 = vmatpush2.msra.mxu0 %v175
    %442 = vmatprep.subr.mxu0 0.0
    %443 = vmatpush2.msra.mxu0 %v174
    %444 = vmatprep.subr.mxu0 0.0
    %445 = vmatpush2.msra.mxu0 %v173
    %446 = vmatprep.subr.mxu0 0.0
    %447 = vmatpush2.msra.mxu0 %v172
    %448 = vmatprep.subr.mxu0 0.0
    %449 = vmatpush2.msra.mxu0 %v171
    %450 = vmatprep.subr.mxu0 0.0
    %451 = vmatpush2.msra.mxu0 %v170
    %452 = vmatprep.subr.mxu0 0.0
    %453 = vmatpush2.msra.mxu0 %v169
    %454 = vmatprep.subr.mxu0 0.0
    %455 = vmatpush2.msra.mxu0 %v168
    %456 = vmatprep.subr.mxu0 0.0
    %457 = vmatpush2.msra.mxu0 %v167
    %458 = vmatprep.subr.mxu0 0.0
    %459 = vmatpush2.msra.mxu0 %v166
    %460 = vmatprep.subr.mxu0 0.0
    %461 = vmatpush2.msra.mxu0 %v165
    %462 = vmatprep.subr.mxu0 0.0
    %463 = vmatpush2.msra.mxu0 %v164
    %464 = vmatprep.subr.mxu0 0.0
    %465 = vmatpush2.msra.mxu0 %v163
    %466 = vmatprep.subr.mxu0 0.0
    %467 = vmatpush2.msra.mxu0 %v162
    %468 = vmatprep.subr.mxu0 0.0
    %469 = vmatpush2.msra.mxu0 %v161
    %470 = vmatprep.mubr.f32.mxu0 %v310
    %471 = vmatmul.mubr.f32.gmra.mxu0 %v308
    %v472 = vpop.f32.mrf.mxu0
    %v473 = vadd.f32 %v403, %v472
    %v474 = vpop.f32.mrf.mxu0
    %475 = vdwg.mxu0
    %476 = vmatprep.subr.mxu0 0.0
    %477 = vmatpush1.msra.mxu0 %v192
    %478 = vmatprep.subr.mxu0 0.0
    %479 = vmatpush1.msra.mxu0 %v191
    %480 = vmatprep.subr.mxu0 0.0
    %481 = vmatpush1.msra.mxu0 %v190
    %482 = vmatprep.subr.mxu0 0.0
    %483 = vmatpush1.msra.mxu0 %v189
    %484 = vmatprep.subr.mxu0 0.0
    %485 = vmatpush1.msra.mxu0 %v188
    %486 = vmatprep.subr.mxu0 0.0
    %487 = vmatpush1.msra.mxu0 %v187
    %488 = vmatprep.subr.mxu0 0.0
    %489 = vmatpush1.msra.mxu0 %v186
    %490 = vmatprep.subr.mxu0 0.0
    %491 = vmatpush1.msra.mxu0 %v185
    %492 = vmatprep.subr.mxu0 0.0
    %493 = vmatpush1.msra.mxu0 %v184
    %494 = vmatprep.subr.mxu0 0.0
    %495 = vmatpush1.msra.mxu0 %v183
    %496 = vmatprep.subr.mxu0 0.0
    %497 = vmatpush1.msra.mxu0 %v182
    %498 = vmatprep.subr.mxu0 0.0
    %499 = vmatpush1.msra.mxu0 %v181
    %500 = vmatprep.subr.mxu0 0.0
    %501 = vmatpush1.msra.mxu0 %v180
    %502 = vmatprep.subr.mxu0 0.0
    %503 = vmatpush1.msra.mxu0 %v179
    %504 = vmatprep.subr.mxu0 0.0
    %505 = vmatpush1.msra.mxu0 %v178
    %506 = vmatprep.subr.mxu0 0.0
    %507 = vmatpush1.msra.mxu0 %v177
    %508 = vmatprep.subr.mxu0 0.0
    %509 = vmatpush2.msra.mxu0 %v208
    %510 = vmatprep.subr.mxu0 0.0
    %511 = vmatpush2.msra.mxu0 %v207
    %512 = vmatprep.subr.mxu0 0.0
    %513 = vmatpush2.msra.mxu0 %v206
    %514 = vmatprep.subr.mxu0 0.0
    %515 = vmatpush2.msra.mxu0 %v205
    %516 = vmatprep.subr.mxu0 0.0
    %517 = vmatpush2.msra.mxu0 %v204
    %518 = vmatprep.subr.mxu0 0.0
    %519 = vmatpush2.msra.mxu0 %v203
    %520 = vmatprep.subr.mxu0 0.0
    %521 = vmatpush2.msra.mxu0 %v202
    %522 = vmatprep.subr.mxu0 0.0
    %523 = vmatpush2.msra.mxu0 %v201
    %524 = vmatprep.subr.mxu0 0.0
    %525 = vmatpush2.msra.mxu0 %v200
    %526 = vmatprep.subr.mxu0 0.0
    %527 = vmatpush2.msra.mxu0 %v199
    %528 = vmatprep.subr.mxu0 0.0
    %529 = vmatpush2.msra.mxu0 %v198
    %530 = vmatprep.subr.mxu0 0.0
    %531 = vmatpush2.msra.mxu0 %v197
    %532 = vmatprep.subr.mxu0 0.0
    %533 = vmatpush2.msra.mxu0 %v196
    %534 = vmatprep.subr.mxu0 0.0
    %535 = vmatpush2.msra.mxu0 %v195
    %536 = vmatprep.subr.mxu0 0.0
    %537 = vmatpush2.msra.mxu0 %v194
    %538 = vmatprep.subr.mxu0 0.0
    %539 = vmatpush2.msra.mxu0 %v193
    %540 = vmatprep.mubr.f32.mxu0 %v326
    %541 = vmatmul.mubr.f32.gmra.mxu0 %v318
    %v542 = vpop.f32.mrf.mxu0
    %v543 = vadd.f32 %v473, %v542
    %v544 = vpop.f32.mrf.mxu0
    %545 = vdwg.mxu0
    %546 = vmatprep.subr.mxu0 0.0
    %547 = vmatpush1.msra.mxu0 0.0
    %548 = vmatprep.subr.mxu0 0.0
    %549 = vmatpush1.msra.mxu0 0.0
    %550 = vmatprep.subr.mxu0 0.0
    %551 = vmatpush1.msra.mxu0 0.0
    %552 = vmatprep.subr.mxu0 0.0
    %553 = vmatpush1.msra.mxu0 0.0
    %554 = vmatprep.subr.mxu0 0.0
    %555 = vmatpush1.msra.mxu0 0.0
    %556 = vmatprep.subr.mxu0 0.0
    %557 = vmatpush1.msra.mxu0 0.0
    %558 = vmatprep.subr.mxu0 0.0
    %559 = vmatpush1.msra.mxu0 0.0
    %560 = vmatprep.subr.mxu0 0.0
    %561 = vmatpush1.msra.mxu0 0.0
    %562 = vmatprep.subr.mxu0 0.0
    %563 = vmatpush1.msra.mxu0 0.0
    %564 = vmatprep.subr.mxu0 0.0
    %565 = vmatpush1.msra.mxu0 0.0
    %566 = vmatprep.subr.mxu0 0.0
    %567 = vmatpush1.msra.mxu0 0.0
    %568 = vmatprep.subr.mxu0 0.0
    %569 = vmatpush1.msra.mxu0 0.0
    %570 = vmatprep.subr.mxu0 0.0
    %571 = vmatpush1.msra.mxu0 0.0
    %572 = vmatprep.subr.mxu0 0.0
    %573 = vmatpush1.msra.mxu0 0.0
    %574 = vmatprep.subr.mxu0 0.0
    %575 = vmatpush1.msra.mxu0 %v210
    %576 = vmatprep.subr.mxu0 0.0
    %577 = vmatpush1.msra.mxu0 %v209
    %578 = vmatprep.subr.mxu0 0.0
    %579 = vmatpush2.msra.mxu0 0.0
    %580 = vmatprep.subr.mxu0 0.0
    %581 = vmatpush2.msra.mxu0 0.0
    %582 = vmatprep.subr.mxu0 0.0
    %583 = vmatpush2.msra.mxu0 0.0
    %584 = vmatprep.subr.mxu0 0.0
    %585 = vmatpush2.msra.mxu0 0.0
    %586 = vmatprep.subr.mxu0 0.0
    %587 = vmatpush2.msra.mxu0 0.0
    %588 = vmatprep.subr.mxu0 0.0
    %589 = vmatpush2.msra.mxu0 0.0
    %590 = vmatprep.subr.mxu0 0.0
    %591 = vmatpush2.msra.mxu0 0.0
    %592 = vmatprep.subr.mxu0 0.0
    %593 = vmatpush2.msra.mxu0 0.0
    %594 = vmatprep.subr.mxu0 0.0
    %595 = vmatpush2.msra.mxu0 0.0
    %596 = vmatprep.subr.mxu0 0.0
    %597 = vmatpush2.msra.mxu0 0.0
    %598 = vmatprep.subr.mxu0 0.0
    %599 = vmatpush2.msra.mxu0 0.0
    %600 = vmatprep.subr.mxu0 0.0
    %601 = vmatpush2.msra.mxu0 0.0
    %602 = vmatprep.subr.mxu0 0.0
    %603 = vmatpush2.msra.mxu0 0.0
    %604 = vmatprep.subr.mxu0 0.0
    %605 = vmatpush2.msra.mxu0 0.0
    %606 = vmatprep.subr.mxu0 0.0
    %607 = vmatpush2.msra.mxu0 0.0
    %608 = vmatprep.subr.mxu0 0.0
    %609 = vmatpush2.msra.mxu0 0.0
    %610 = vmatprep.mubr.f32.mxu0 0.0
    %611 = vmatmul.mubr.f32.gmra.mxu0 %v334
    %v612 = vpop.f32.mrf.mxu0
    %v613 = vadd.f32 %v543, %v612
    %v614 = vpop.f32.mrf.mxu0
    %615 = vdwg.mxu0
    %v616 = vld [vmem:[%s4] sm:$0x1]
    %v618 = vlaneseq
    %v619 = vshrl.u32 %v618, 7
    %v620 = vsub.s32 0, %v619
    %v621 = vrot.slane %v616, %v620
    %v623 = vadd.f32 %v613, %v621
    %v624 = vmax.f32 %v623, 0.0
    %v625 = vld [vmem:[#allocation10] sm:$0xff]
    %v626 = vld [vmem:[#allocation10 + $0x8] sm:$0xff]
    %v627 = vld [vmem:[#allocation10 + $0x10] sm:$0xff]
    %v628 = vld [vmem:[#allocation10 + $0x18] sm:$0xff]
    %v629 = vld [vmem:[#allocation10 + $0x20] sm:$0xff]
    %v630 = vld [vmem:[#allocation10 + $0x28] sm:$0xff]
    %v631 = vld [vmem:[#allocation10 + $0x30] sm:$0xff]
    %v632 = vld [vmem:[#allocation10 + $0x38] sm:$0xff]
    %v633 = vld [vmem:[#allocation10 + $0x40] sm:$0xff]
    %v634 = vld [vmem:[#allocation10 + $0x48] sm:$0xff]
    %v635 = vld [vmem:[#allocation10 + $0x50] sm:$0xff]
    %v636 = vld [vmem:[#allocation10 + $0x58] sm:$0xff]
    %v637 = vld [vmem:[#allocation10 + $0x60] sm:$0xff]
    %v638 = vld [vmem:[#allocation10 + $0x68] sm:$0xff]
    %v639 = vld [vmem:[#allocation10 + $0x70] sm:$0xff]
    %v640 = vld [vmem:[#allocation10 + $0x78] sm:$0xff]
    %v641 = vld [vmem:[%s6] sm:$0x1]
    %v643 = vlaneseq
    %v644 = vshrl.u32 %v643, 7
    %v645 = vsub.s32 0, %v644
    %v646 = vrot.slane %v641, %v645
    %648 = vmatprep.subr.mxu0 0.0
    %649 = vmatpush1.msra.mxu0 %v640
    %650 = vmatprep.subr.mxu0 0.0
    %651 = vmatpush1.msra.mxu0 %v639
    %652 = vmatprep.subr.mxu0 0.0
    %653 = vmatpush1.msra.mxu0 %v638
    %654 = vmatprep.subr.mxu0 0.0
    %655 = vmatpush1.msra.mxu0 %v637
    %656 = vmatprep.subr.mxu0 0.0
    %657 = vmatpush1.msra.mxu0 %v636
    %658 = vmatprep.subr.mxu0 0.0
    %659 = vmatpush1.msra.mxu0 %v635
    %660 = vmatprep.subr.mxu0 0.0
    %661 = vmatpush1.msra.mxu0 %v634
    %662 = vmatprep.subr.mxu0 0.0
    %663 = vmatpush1.msra.mxu0 %v633
    %664 = vmatprep.subr.mxu0 0.0
    %665 = vmatpush1.msra.mxu0 %v632
    %666 = vmatprep.subr.mxu0 0.0
    %667 = vmatpush1.msra.mxu0 %v631
    %668 = vmatprep.subr.mxu0 0.0
    %669 = vmatpush1.msra.mxu0 %v630
    %670 = vmatprep.subr.mxu0 0.0
    %671 = vmatpush1.msra.mxu0 %v629
    %672 = vmatprep.subr.mxu0 0.0
    %673 = vmatpush1.msra.mxu0 %v628
    %674 = vmatprep.subr.mxu0 0.0
    %675 = vmatpush1.msra.mxu0 %v627
    %676 = vmatprep.subr.mxu0 0.0
    %677 = vmatpush1.msra.mxu0 %v626
    %678 = vmatprep.subr.mxu0 0.0
    %679 = vmatpush1.msra.mxu0 %v625
    %680 = vmatprep.subr.mxu0 0.0
    %681 = vmatpush2.msra.mxu0 0.0
    %682 = vmatprep.subr.mxu0 0.0
    %683 = vmatpush2.msra.mxu0 0.0
    %684 = vmatprep.subr.mxu0 0.0
    %685 = vmatpush2.msra.mxu0 0.0
    %686 = vmatprep.subr.mxu0 0.0
    %687 = vmatpush2.msra.mxu0 0.0
    %688 = vmatprep.subr.mxu0 0.0
    %689 = vmatpush2.msra.mxu0 0.0
    %690 = vmatprep.subr.mxu0 0.0
    %691 = vmatpush2.msra.mxu0 0.0
    %692 = vmatprep.subr.mxu0 0.0
    %693 = vmatpush2.msra.mxu0 0.0
    %694 = vmatprep.subr.mxu0 0.0
    %695 = vmatpush2.msra.mxu0 0.0
    %696 = vmatprep.subr.mxu0 0.0
    %697 = vmatpush2.msra.mxu0 0.0
    %698 = vmatprep.subr.mxu0 0.0
    %699 = vmatpush2.msra.mxu0 0.0
    %700 = vmatprep.subr.mxu0 0.0
    %701 = vmatpush2.msra.mxu0 0.0
    %702 = vmatprep.subr.mxu0 0.0
    %703 = vmatpush2.msra.mxu0 0.0
    %704 = vmatprep.subr.mxu0 0.0
    %705 = vmatpush2.msra.mxu0 0.0
    %706 = vmatprep.subr.mxu0 0.0
    %707 = vmatpush2.msra.mxu0 0.0
    %708 = vmatprep.subr.mxu0 0.0
    %709 = vmatpush2.msra.mxu0 0.0
    %710 = vmatprep.subr.mxu0 0.0
    %711 = vmatpush2.msra.mxu0 0.0
    %712 = vmatprep.mubr.f32.mxu0 0.0
    %713 = vmatmul.mubr.f32.gmra.mxu0 %v624
    %v714 = vpop.f32.mrf.mxu0
    %v715 = vadd.f32 %v646, %v714
    %v716 = vpop.f32.mrf.mxu0
    %717 = vdwg.mxu0
    %v718 = vmax.f32 %v715, 0.0
    %v719 = vld [vmem:[#allocation11] sm:$0xff]
    %v720 = vld [vmem:[#allocation11 + $0x8] sm:$0xff]
    %v721 = vld [vmem:[#allocation11 + $0x10] sm:$0xff]
    %v722 = vld [vmem:[#allocation11 + $0x18] sm:$0xff]
    %v723 = vld [vmem:[#allocation11 + $0x20] sm:$0xff]
    %v724 = vld [vmem:[#allocation11 + $0x28] sm:$0xff]
    %v725 = vld [vmem:[#allocation11 + $0x30] sm:$0xff]
    %v726 = vld [vmem:[#allocation11 + $0x38] sm:$0xff]
    %v727 = vld [vmem:[#allocation11 + $0x40] sm:$0xff]
    %v728 = vld [vmem:[#allocation11 + $0x48] sm:$0xff]
    %v729 = vld [vmem:[#allocation11 + $0x50] sm:$0xff]
    %v730 = vld [vmem:[#allocation11 + $0x58] sm:$0xff]
    %v731 = vld [vmem:[#allocation11 + $0x60] sm:$0xff]
    %v732 = vld [vmem:[#allocation11 + $0x68] sm:$0xff]
    %v733 = vld [vmem:[#allocation11 + $0x70] sm:$0xff]
    %v734 = vld [vmem:[#allocation11 + $0x78] sm:$0xff]
    %v735 = vld [vmem:[%s8] sm:$0x1]
    %v737 = vlaneseq
    %v738 = vshrl.u32 %v737, 7
    %v739 = vsub.s32 0, %v738
    %v740 = vrot.slane %v735, %v739
    %742 = vmatprep.subr.mxu0 0.0
    %743 = vmatpush1.msra.mxu0 %v734
    %744 = vmatprep.subr.mxu0 0.0
    %745 = vmatpush1.msra.mxu0 %v733
    %746 = vmatprep.subr.mxu0 0.0
    %747 = vmatpush1.msra.mxu0 %v732
    %748 = vmatprep.subr.mxu0 0.0
    %749 = vmatpush1.msra.mxu0 %v731
    %750 = vmatprep.subr.mxu0 0.0
    %751 = vmatpush1.msra.mxu0 %v730
    %752 = vmatprep.subr.mxu0 0.0
    %753 = vmatpush1.msra.mxu0 %v729
    %754 = vmatprep.subr.mxu0 0.0
    %755 = vmatpush1.msra.mxu0 %v728
    %756 = vmatprep.subr.mxu0 0.0
    %757 = vmatpush1.msra.mxu0 %v727
    %758 = vmatprep.subr.mxu0 0.0
    %759 = vmatpush1.msra.mxu0 %v726
    %760 = vmatprep.subr.mxu0 0.0
    %761 = vmatpush1.msra.mxu0 %v725
    %762 = vmatprep.subr.mxu0 0.0
    %763 = vmatpush1.msra.mxu0 %v724
    %764 = vmatprep.subr.mxu0 0.0
    %765 = vmatpush1.msra.mxu0 %v723
    %766 = vmatprep.subr.mxu0 0.0
    %767 = vmatpush1.msra.mxu0 %v722
    %768 = vmatprep.subr.mxu0 0.0
    %769 = vmatpush1.msra.mxu0 %v721
    %770 = vmatprep.subr.mxu0 0.0
    %771 = vmatpush1.msra.mxu0 %v720
    %772 = vmatprep.subr.mxu0 0.0
    %773 = vmatpush1.msra.mxu0 %v719
    %774 = vmatprep.subr.mxu0 0.0
    %775 = vmatpush2.msra.mxu0 0.0
    %776 = vmatprep.subr.mxu0 0.0
    %777 = vmatpush2.msra.mxu0 0.0
    %778 = vmatprep.subr.mxu0 0.0
    %779 = vmatpush2.msra.mxu0 0.0
    %780 = vmatprep.subr.mxu0 0.0
    %781 = vmatpush2.msra.mxu0 0.0
    %782 = vmatprep.subr.mxu0 0.0
    %783 = vmatpush2.msra.mxu0 0.0
    %784 = vmatprep.subr.mxu0 0.0
    %785 = vmatpush2.msra.mxu0 0.0
    %786 = vmatprep.subr.mxu0 0.0
    %787 = vmatpush2.msra.mxu0 0.0
    %788 = vmatprep.subr.mxu0 0.0
    %789 = vmatpush2.msra.mxu0 0.0
    %790 = vmatprep.subr.mxu0 0.0
    %791 = vmatpush2.msra.mxu0 0.0
    %792 = vmatprep.subr.mxu0 0.0
    %793 = vmatpush2.msra.mxu0 0.0
    %794 = vmatprep.subr.mxu0 0.0
    %795 = vmatpush2.msra.mxu0 0.0
    %796 = vmatprep.subr.mxu0 0.0
    %797 = vmatpush2.msra.mxu0 0.0
    %798 = vmatprep.subr.mxu0 0.0
    %799 = vmatpush2.msra.mxu0 0.0
    %800 = vmatprep.subr.mxu0 0.0
    %801 = vmatpush2.msra.mxu0 0.0
    %802 = vmatprep.subr.mxu0 0.0
    %803 = vmatpush2.msra.mxu0 0.0
    %804 = vmatprep.subr.mxu0 0.0
    %805 = vmatpush2.msra.mxu0 0.0
    %806 = vmatprep.mubr.f32.mxu0 0.0
    %807 = vmatmul.mubr.f32.gmra.mxu0 %v718
    %v808 = vpop.f32.mrf.mxu0
    %v809 = vadd.f32 %v740, %v808
    %v810 = vpop.f32.mrf.mxu0
    %811 = vdwg.mxu0
    %v812 = vlaneseq
    %v813 = vand.u32 %v812, 127
    %vm814 = vcmp.ge.s32.totalorder %v813, 5
    %vm815 = vcmp.lt.s32.totalorder %v813, 10
    %vm816 = vmand %vm814, %vm815
    %v817 = vmul.f32 %v809, 1.442695
    %v818 = vpow.pop %v817
    %v819 = vsel %vm816, %v818, %v809
    %820 = vst [vmem:[#allocation13] sm:$0x3] %v819
    // Predicated region
    $region62: #{tpu_custom_call.1} parent=1 // pred_check
      _
    $region63: #{tpu_custom_call.1} parent=1 // pred_check_branch
      %822 = sbr.rel (0) target = $region65
    $region64: #{tpu_custom_call.1} parent=1 // pred_region
      %s824 = ssub.s32 32, 32
      %825 = vsyncadd [#allocation4], %s824
      %s827 = sshll.u32 [#allocation13], 4
      %s828 = int_to_ptr.vmem [resolvable:$true] %s827
      %830 = dma.vmem_to_hbm [thread:$0]  %s828, 32, %s9, [#allocation4]
    $region65: #{tpu_custom_call.1} parent=1 // pred_fallthru
      _
    // Predicated region
    $region66: #{tpu_custom_call.1} parent=1 // pred_check
      _
    $region67: #{tpu_custom_call.1} parent=1 // pred_check_branch
      %832 = sbr.rel (0) target = $region69
    $region68: #{tpu_custom_call.1} parent=1 // pred_region
      %833 = dma.done [#allocation4], 32
    $region69: #{tpu_custom_call.1} parent=1 // pred_fallthru
      _
    %834 = vsyncpa [#allocation3], 1
    %835 = vsyncpa [#allocation6], 1
    %836 = vsyncpa [#allocation9], 1
    %837 = vsyncpa [#allocation12], 1
    %838 = vsyncpa [#allocation4], 1

// kernel: tpu_custom_call.1
$region0: #{tpu_custom_call.1}
  #allocation0 [shape = 'u32[]', space=smem, size = 0x4, offset = 0x4, fixed_abs, tag = 'smem constant byte address 0x4 - core index']
  #allocation1 [shape = 'u32[144,128]{1,0:T(1,128)}', space=vmem, size = 0x12000, scoped, tag = 'internal scratch']
  %s0 = inlined_call_operand.hbm [shape: f32[2,784], index: 0, kind: input, shape index: {}]
  %s1 = inlined_call_operand.hbm [shape: f32[2,10], index: 1, kind: input, shape index: {}]
  %s2 = inlined_call_operand.hbm [shape: f32[784,128], index: 2, kind: input, shape index: {}]
  %s3 = inlined_call_operand.hbm [shape: f32[10,128], index: 3, kind: input, shape index: {}]
  %s4 = inlined_call_operand.vmem [shape: f32[1,128], index: 4, kind: input, shape index: {}]
  %s5 = inlined_call_operand.hbm [shape: f32[128,128], index: 5, kind: input, shape index: {}]
  %s6 = inlined_call_operand.vmem [shape: f32[1,128], index: 6, kind: input, shape index: {}]
  %s7 = inlined_call_operand.hbm [shape: f32[128,128], index: 7, kind: input, shape index: {}]
  %s8 = inlined_call_operand.vmem [shape: f32[1,128], index: 8, kind: input, shape index: {}]
  %s9 = inlined_call_operand.hbm [shape: f32[2,128], index: 9, kind: output, shape index: {}]
  %s10 = sld [smem:[#allocation0]]
  $region70: #{tpu_custom_call.1} parent=0
    _
  %s12 = ssub.s32 1, %s10
  %s13 = scalar_select 0, %s12, %s10
  $region1: #{tpu_custom_call.1} parent=0
    #allocation2 [shape = 'u8[7168]{0}', space=vmem, size = 0x1c00, scoped, tag = 'input window, operand 0, single buffered']
    #allocation3 [shape = 's32[1]{0}', space=sflag, size = 0x4, scoped, tag = 'scoped memory for tpu_custom_call.1']
    #allocation4 [shape = 's32[1]{0}', space=sflag, size = 0x4, scoped, tag = 'scoped memory for tpu_custom_call.1']
    #allocation5 [shape = 'u8[1024]{0}', space=vmem, size = 0x400, scoped, tag = 'input window, operand 1, single buffered']
    #allocation6 [shape = 's32[1]{0}', space=sflag, size = 0x4, scoped, tag = 'scoped memory for tpu_custom_call.1']
    #allocation7 [shape = 'u8[401408]{0}', space=vmem, size = 0x62000, scoped, tag = 'input window, operand 2, single buffered']
    #allocation8 [shape = 'u8[8192]{0}', space=vmem, size = 0x2000, scoped, tag = 'input window, operand 3, single buffered']
    #allocation9 [shape = 's32[1]{0}', space=sflag, size = 0x4, scoped, tag = 'scoped memory for tpu_custom_call.1']
    #allocation10 [shape = 'u8[65536]{0}', space=vmem, size = 0x10000, scoped, tag = 'input window, operand 5, single buffered']
    #allocation11 [shape = 'u8[65536]{0}', space=vmem, size = 0x10000, scoped, tag = 'input window, operand 7, single buffered']
    #allocation12 [shape = 's32[1]{0}', space=sflag, size = 0x4, scoped, tag = 'scoped memory for tpu_custom_call.1']
    #allocation13 [shape = 'u8[1024]{0}', space=vmem, size = 0x400, scoped, tag = 'output window, operand 0, single buffered']
    %14 = vsyncpa [#allocation3], 0
    %15 = vsyncpa [#allocation6], 0
    %16 = vsyncpa [#allocation9], 0
    %17 = vsyncpa [#allocation12], 0
    %18 = vsyncpa [#allocation4], 0
    // Predicated region
    $region2: #{tpu_custom_call.1} parent=1 // pred_check
      _
    $region3: #{tpu_custom_call.1} parent=1 // pred_check_branch
      %20 = sbr.rel (0) target = $region5
    $region4: #{tpu_custom_call.1} parent=1 // pred_region
      %s22 = ssub.s32 224, 224
      %23 = vsyncadd [#allocation3], %s22
      %s25 = sshll.u32 [#allocation2], 4
      %s26 = int_to_ptr.vmem [resolvable:$true] %s25
      %28 = dma.hbm_to_vmem [thread:$0]  %s0, 224, %s26, [#allocation3]
    $region5: #{tpu_custom_call.1} parent=1 // pred_fallthru
      _
    // Predicated region
    $region6: #{tpu_custom_call.1} parent=1 // pred_check
      _
    $region7: #{tpu_custom_call.1} parent=1 // pred_check_branch
      %30 = sbr.rel (0) target = $region9
    $region8: #{tpu_custom_call.1} parent=1 // pred_region
      %s32 = ssub.s32 32, 32
      %33 = vsyncadd [#allocation6], %s32
      %s35 = sshll.u32 [#allocation5], 4
      %s36 = int_to_ptr.vmem [resolvable:$true] %s35
      %38 = dma.hbm_to_vmem [thread:$0]  %s1, 32, %s36, [#allocation6]
    $region9: #{tpu_custom_call.1} parent=1 // pred_fallthru
      _
    // Predicated region
    $region10: #{tpu_custom_call.1} parent=1 // pred_check
      _
    $region11: #{tpu_custom_call.1} parent=1 // pred_check_branch
      %40 = sbr.rel (0) target = $region13
    $region12: #{tpu_custom_call.1} parent=1 // pred_region
      %s42 = ssub.s32 12544, 12544
      %43 = vsyncadd [#allocation6], %s42
      %s44 = sshll.u32 [#allocation7], 4
      %s45 = int_to_ptr.vmem [resolvable:$true] %s44
      %50 = dma.hbm_to_vmem [thread:$0]  %s2, 12544, %s45, [#allocation6], 128, 128, 8
    $region13: #{tpu_custom_call.1} parent=1 // pred_fallthru
      _
    // Predicated region
    $region14: #{tpu_custom_call.1} parent=1 // pred_check
      _
    $region15: #{tpu_custom_call.1} parent=1 // pred_check_branch
      %52 = sbr.rel (0) target = $region17
    $region16: #{tpu_custom_call.1} parent=1 // pred_region
      %s54 = ssub.s32 256, 256
      %55 = vsyncadd [#allocation9], %s54
      %s56 = sshll.u32 [#allocation8], 4
      %s57 = int_to_ptr.vmem [resolvable:$true] %s56
      %62 = dma.hbm_to_vmem [thread:$0]  %s3, 256, %s57, [#allocation9], 128, 128, 8
    $region17: #{tpu_custom_call.1} parent=1 // pred_fallthru
      _
    // Predicated region
    $region18: #{tpu_custom_call.1} parent=1 // pred_check
      _
    $region19: #{tpu_custom_call.1} parent=1 // pred_check_branch
      %64 = sbr.rel (0) target = $region21
    $region20: #{tpu_custom_call.1} parent=1 // pred_region
      _
    $region21: #{tpu_custom_call.1} parent=1 // pred_fallthru
      _
    // Predicated region
    $region22: #{tpu_custom_call.1} parent=1 // pred_check
      _
    $region23: #{tpu_custom_call.1} parent=1 // pred_check_branch
      %66 = sbr.rel (0) target = $region25
    $region24: #{tpu_custom_call.1} parent=1 // pred_region
      %s68 = ssub.s32 2048, 2048
      %69 = vsyncadd [#allocation9], %s68
      %s70 = sshll.u32 [#allocation10], 4
      %s71 = int_to_ptr.vmem [resolvable:$true] %s70
      %76 = dma.hbm_to_vmem [thread:$0]  %s5, 2048, %s71, [#allocation9], 128, 128, 8
    $region25: #{tpu_custom_call.1} parent=1 // pred_fallthru
      _
    // Predicated region
    $region26: #{tpu_custom_call.1} parent=1 // pred_check
      _
    $region27: #{tpu_custom_call.1} parent=1 // pred_check_branch
      %78 = sbr.rel (0) target = $region29
    $region28: #{tpu_custom_call.1} parent=1 // pred_region
      _
    $region29: #{tpu_custom_call.1} parent=1 // pred_fallthru
      _
    // Predicated region
    $region30: #{tpu_custom_call.1} parent=1 // pred_check
      _
    $region31: #{tpu_custom_call.1} parent=1 // pred_check_branch
      %80 = sbr.rel (0) target = $region33
    $region32: #{tpu_custom_call.1} parent=1 // pred_region
      %s82 = ssub.s32 2048, 2048
      %83 = vsyncadd [#allocation12], %s82
      %s84 = sshll.u32 [#allocation11], 4
      %s85 = int_to_ptr.vmem [resolvable:$true] %s84
      %90 = dma.hbm_to_vmem [thread:$0]  %s7, 2048, %s85, [#allocation12], 128, 128, 8
    $region33: #{tpu_custom_call.1} parent=1 // pred_fallthru
      _
    // Predicated region
    $region34: #{tpu_custom_call.1} parent=1 // pred_check
      _
    $region35: #{tpu_custom_call.1} parent=1 // pred_check_branch
      %92 = sbr.rel (0) target = $region37
    $region36: #{tpu_custom_call.1} parent=1 // pred_region
      _
    $region37: #{tpu_custom_call.1} parent=1 // pred_fallthru
      _
    // Predicated region
    $region38: #{tpu_custom_call.1} parent=1 // pred_check
      _
    $region39: #{tpu_custom_call.1} parent=1 // pred_check_branch
      %94 = sbr.rel (0) target = $region41
    $region40: #{tpu_custom_call.1} parent=1 // pred_region
      %95 = dma.done [#allocation3], 224
    $region41: #{tpu_custom_call.1} parent=1 // pred_fallthru
      _
    // Predicated region
    $region42: #{tpu_custom_call.1} parent=1 // pred_check
      _
    $region43: #{tpu_custom_call.1} parent=1 // pred_check_branch
      %97 = sbr.rel (0) target = $region45
    $region44: #{tpu_custom_call.1} parent=1 // pred_region
      %98 = dma.done [#allocation6], 32
    $region45: #{tpu_custom_call.1} parent=1 // pred_fallthru
      _
    // Predicated region
    $region46: #{tpu_custom_call.1} parent=1 // pred_check
      _
    $region47: #{tpu_custom_call.1} parent=1 // pred_check_branch
      %100 = sbr.rel (0) target = $region49
    $region48: #{tpu_custom_call.1} parent=1 // pred_region
      %101 = dma.done [#allocation6], 12544
    $region49: #{tpu_custom_call.1} parent=1 // pred_fallthru
      _
    // Predicated region
    $region50: #{tpu_custom_call.1} parent=1 // pred_check
      _
    $region51: #{tpu_custom_call.1} parent=1 // pred_check_branch
      %103 = sbr.rel (0) target = $region53
    $region52: #{tpu_custom_call.1} parent=1 // pred_region
      %104 = dma.done [#allocation9], 256
    $region53: #{tpu_custom_call.1} parent=1 // pred_fallthru
      _
    // Predicated region
    $region54: #{tpu_custom_call.1} parent=1 // pred_check
      _
    $region55: #{tpu_custom_call.1} parent=1 // pred_check_branch
      %106 = sbr.rel (0) target = $region57
    $region56: #{tpu_custom_call.1} parent=1 // pred_region
      %107 = dma.done [#allocation9], 2048
    $region57: #{tpu_custom_call.1} parent=1 // pred_fallthru
      _
    // Predicated region
    $region58: #{tpu_custom_call.1} parent=1 // pred_check
      _
    $region59: #{tpu_custom_call.1} parent=1 // pred_check_branch
      %109 = sbr.rel (0) target = $region61
    $region60: #{tpu_custom_call.1} parent=1 // pred_region
      %110 = dma.done [#allocation12], 2048
    $region61: #{tpu_custom_call.1} parent=1 // pred_fallthru
      _
    %v111 = vld [vmem:[#allocation2] sm:$0xff]
    %v112 = vld [vmem:[#allocation2 + $0x8] sm:$0x3f]
    %v113 = vld [vmem:[#allocation7] sm:$0xff]
    %v114 = vld [vmem:[#allocation7 + $0x8] sm:$0xff]
    %v115 = vld [vmem:[#allocation7 + $0x10] sm:$0xff]
    %v116 = vld [vmem:[#allocation7 + $0x18] sm:$0xff]
    %v117 = vld [vmem:[#allocation7 + $0x20] sm:$0xff]
    %v118 = vld [vmem:[#allocation7 + $0x28] sm:$0xff]
    %v119 = vld [vmem:[#allocation7 + $0x30] sm:$0xff]
    %v120 = vld [vmem:[#allocation7 + $0x38] sm:$0xff]
    %v121 = vld [vmem:[#allocation7 + $0x40] sm:$0xff]
    %v122 = vld [vmem:[#allocation7 + $0x48] sm:$0xff]
    %v123 = vld [vmem:[#allocation7 + $0x50] sm:$0xff]
    %v124 = vld [vmem:[#allocation7 + $0x58] sm:$0xff]
    %v125 = vld [vmem:[#allocation7 + $0x60] sm:$0xff]
    %v126 = vld [vmem:[#allocation7 + $0x68] sm:$0xff]
    %v127 = vld [vmem:[#allocation7 + $0x70] sm:$0xff]
    %v128 = vld [vmem:[#allocation7 + $0x78] sm:$0xff]
    %v129 = vld [vmem:[#allocation7 + $0x80] sm:$0xff]
    %v130 = vld [vmem:[#allocation7 + $0x88] sm:$0xff]
    %v131 = vld [vmem:[#allocation7 + $0x90] sm:$0xff]
    %v132 = vld [vmem:[#allocation7 + $0x98] sm:$0xff]
    %v133 = vld [vmem:[#allocation7 + $0xa0] sm:$0xff]
    %v134 = vld [vmem:[#allocation7 + $0xa8] sm:$0xff]
    %v135 = vld [vmem:[#allocation7 + $0xb0] sm:$0xff]
    %v136 = vld [vmem:[#allocation7 + $0xb8] sm:$0xff]
    %v137 = vld [vmem:[#allocation7 + $0xc0] sm:$0xff]
    %v138 = vld [vmem:[#allocation7 + $0xc8] sm:$0xff]
    %v139 = vld [vmem:[#allocation7 + $0xd0] sm:$0xff]
    %v140 = vld [vmem:[#allocation7 + $0xd8] sm:$0xff]
    %v141 = vld [vmem:[#allocation7 + $0xe0] sm:$0xff]
    %v142 = vld [vmem:[#allocation7 + $0xe8] sm:$0xff]
    %v143 = vld [vmem:[#allocation7 + $0xf0] sm:$0xff]
    %v144 = vld [vmem:[#allocation7 + $0xf8] sm:$0xff]
    %v145 = vld [vmem:[#allocation7 + $0x100] sm:$0xff]
    %v146 = vld [vmem:[#allocation7 + $0x108] sm:$0xff]
    %v147 = vld [vmem:[#allocation7 + $0x110] sm:$0xff]
    %v148 = vld [vmem:[#allocation7 + $0x118] sm:$0xff]
    %v149 = vld [vmem:[#allocation7 + $0x120] sm:$0xff]
    %v150 = vld [vmem:[#allocation7 + $0x128] sm:$0xff]
    %v151 = vld [vmem:[#allocation7 + $0x130] sm:$0xff]
    %v152 = vld [vmem:[#allocation7 + $0x138] sm:$0xff]
    %v153 = vld [vmem:[#allocation7 + $0x140] sm:$0xff]
    %v154 = vld [vmem:[#allocation7 + $0x148] sm:$0xff]
    %v155 = vld [vmem:[#allocation7 + $0x150] sm:$0xff]
    %v156 = vld [vmem:[#allocation7 + $0x158] sm:$0xff]
    %v157 = vld [vmem:[#allocation7 + $0x160] sm:$0xff]
    %v158 = vld [vmem:[#allocation7 + $0x168] sm:$0xff]
    %v159 = vld [vmem:[#allocation7 + $0x170] sm:$0xff]
    %v160 = vld [vmem:[#allocation7 + $0x178] sm:$0xff]
    %v161 = vld [vmem:[#allocation7 + $0x180] sm:$0xff]
    %v162 = vld [vmem:[#allocation7 + $0x188] sm:$0xff]
    %v163 = vld [vmem:[#allocation7 + $0x190] sm:$0xff]
    %v164 = vld [vmem:[#allocation7 + $0x198] sm:$0xff]
    %v165 = vld [vmem:[#allocation7 + $0x1a0] sm:$0xff]
    %v166 = vld [vmem:[#allocation7 + $0x1a8] sm:$0xff]
    %v167 = vld [vmem:[#allocation7 + $0x1b0] sm:$0xff]
    %v168 = vld [vmem:[#allocation7 + $0x1b8] sm:$0xff]
    %v169 = vld [vmem:[#allocation7 + $0x1c0] sm:$0xff]
    %v170 = vld [vmem:[#allocation7 + $0x1c8] sm:$0xff]
    %v171 = vld [vmem:[#allocation7 + $0x1d0] sm:$0xff]
    %v172 = vld [vmem:[#allocation7 + $0x1d8] sm:$0xff]
    %v173 = vld [vmem:[#allocation7 + $0x1e0] sm:$0xff]
    %v174 = vld [vmem:[#allocation7 + $0x1e8] sm:$0xff]
    %v175 = vld [vmem:[#allocation7 + $0x1f0] sm:$0xff]
    %v176 = vld [vmem:[#allocation7 + $0x1f8] sm:$0xff]
    %v177 = vld [vmem:[#allocation7 + $0x200] sm:$0xff]
    %v178 = vld [vmem:[#allocation7 + $0x208] sm:$0xff]
    %v179 = vld [vmem:[#allocation7 + $0x210] sm:$0xff]
    %v180 = vld [vmem:[#allocation7 + $0x218] sm:$0xff]
    %v181 = vld [vmem:[#allocation7 + $0x220] sm:$0xff]
    %v182 = vld [vmem:[#allocation7 + $0x228] sm:$0xff]
    %v183 = vld [vmem:[#allocation7 + $0x230] sm:$0xff]
    %v184 = vld [vmem:[#allocation7 + $0x238] sm:$0xff]
    %v185 = vld [vmem:[#allocation7 + $0x240] sm:$0xff]
    %v186 = vld [vmem:[#allocation7 + $0x248] sm:$0xff]
    %v187 = vld [vmem:[#allocation7 + $0x250] sm:$0xff]
    %v188 = vld [vmem:[#allocation7 + $0x258] sm:$0xff]
    %v189 = vld [vmem:[#allocation7 + $0x260] sm:$0xff]
    %v190 = vld [vmem:[#allocation7 + $0x268] sm:$0xff]
    %v191 = vld [vmem:[#allocation7 + $0x270] sm:$0xff]
    %v192 = vld [vmem:[#allocation7 + $0x278] sm:$0xff]
    %v193 = vld [vmem:[#allocation7 + $0x280] sm:$0xff]
    %v194 = vld [vmem:[#allocation7 + $0x288] sm:$0xff]
    %v195 = vld [vmem:[#allocation7 + $0x290] sm:$0xff]
    %v196 = vld [vmem:[#allocation7 + $0x298] sm:$0xff]
    %v197 = vld [vmem:[#allocation7 + $0x2a0] sm:$0xff]
    %v198 = vld [vmem:[#allocation7 + $0x2a8] sm:$0xff]
    %v199 = vld [vmem:[#allocation7 + $0x2b0] sm:$0xff]
    %v200 = vld [vmem:[#allocation7 + $0x2b8] sm:$0xff]
    %v201 = vld [vmem:[#allocation7 + $0x2c0] sm:$0xff]
    %v202 = vld [vmem:[#allocation7 + $0x2c8] sm:$0xff]
    %v203 = vld [vmem:[#allocation7 + $0x2d0] sm:$0xff]
    %v204 = vld [vmem:[#allocation7 + $0x2d8] sm:$0xff]
    %v205 = vld [vmem:[#allocation7 + $0x2e0] sm:$0xff]
    %v206 = vld [vmem:[#allocation7 + $0x2e8] sm:$0xff]
    %v207 = vld [vmem:[#allocation7 + $0x2f0] sm:$0xff]
    %v208 = vld [vmem:[#allocation7 + $0x2f8] sm:$0xff]
    %v209 = vld [vmem:[#allocation7 + $0x300] sm:$0xff]
    %v210 = vld [vmem:[#allocation7 + $0x308] sm:$0xff]
    %v211 = vld [vmem:[#allocation5] sm:$0x3]
    %v212 = vld [vmem:[#allocation8] sm:$0xff]
    %v213 = vld [vmem:[#allocation8 + $0x8] sm:$0x3]
    %vm214 = vcmask 80896
    %v216 = vsel %vm214, %v211, 0
    %vm218 = vcmask 1041408
    %v220 = vsel %vm218, %v213, 0
    %222 = vmatprep.subr.mxu0 0.0
    %223 = vmatpush1.msra.mxu0 0.0
    %224 = vmatprep.subr.mxu0 0.0
    %225 = vmatpush1.msra.mxu0 0.0
    %226 = vmatprep.subr.mxu0 0.0
    %227 = vmatpush1.msra.mxu0 0.0
    %228 = vmatprep.subr.mxu0 0.0
    %229 = vmatpush1.msra.mxu0 0.0
    %230 = vmatprep.subr.mxu0 0.0
    %231 = vmatpush1.msra.mxu0 0.0
    %232 = vmatprep.subr.mxu0 0.0
    %233 = vmatpush1.msra.mxu0 0.0
    %234 = vmatprep.subr.mxu0 0.0
    %235 = vmatpush1.msra.mxu0 0.0
    %236 = vmatprep.subr.mxu0 0.0
    %237 = vmatpush1.msra.mxu0 0.0
    %238 = vmatprep.subr.mxu0 0.0
    %239 = vmatpush1.msra.mxu0 0.0
    %240 = vmatprep.subr.mxu0 0.0
    %241 = vmatpush1.msra.mxu0 0.0
    %242 = vmatprep.subr.mxu0 0.0
    %243 = vmatpush1.msra.mxu0 0.0
    %244 = vmatprep.subr.mxu0 0.0
    %245 = vmatpush1.msra.mxu0 0.0
    %246 = vmatprep.subr.mxu0 0.0
    %247 = vmatpush1.msra.mxu0 0.0
    %248 = vmatprep.subr.mxu0 0.0
    %249 = vmatpush1.msra.mxu0 0.0
    %250 = vmatprep.subr.mxu0 0.0
    %251 = vmatpush1.msra.mxu0 %v220
    %252 = vmatprep.subr.mxu0 0.0
    %253 = vmatpush1.msra.mxu0 %v212
    %254 = vmatprep.subr.mxu0 0.0
    %255 = vmatpush2.msra.mxu0 0.0
    %256 = vmatprep.subr.mxu0 0.0
    %257 = vmatpush2.msra.mxu0 0.0
    %258 = vmatprep.subr.mxu0 0.0
    %259 = vmatpush2.msra.mxu0 0.0
    %260 = vmatprep.subr.mxu0 0.0
    %261 = vmatpush2.msra.mxu0 0.0
    %262 = vmatprep.subr.mxu0 0.0
    %263 = vmatpush2.msra.mxu0 0.0
    %264 = vmatprep.subr.mxu0 0.0
    %265 = vmatpush2.msra.mxu0 0.0
    %266 = vmatprep.subr.mxu0 0.0
    %267 = vmatpush2.msra.mxu0 0.0
    %268 = vmatprep.subr.mxu0 0.0
    %269 = vmatpush2.msra.mxu0 0.0
    %270 = vmatprep.subr.mxu0 0.0
    %271 = vmatpush2.msra.mxu0 0.0
    %272 = vmatprep.subr.mxu0 0.0
    %273 = vmatpush2.msra.mxu0 0.0
    %274 = vmatprep.subr.mxu0 0.0
    %275 = vmatpush2.msra.mxu0 0.0
    %276 = vmatprep.subr.mxu0 0.0
    %277 = vmatpush2.msra.mxu0 0.0
    %278 = vmatprep.subr.mxu0 0.0
    %279 = vmatpush2.msra.mxu0 0.0
    %280 = vmatprep.subr.mxu0 0.0
    %281 = vmatpush2.msra.mxu0 0.0
    %282 = vmatprep.subr.mxu0 0.0
    %283 = vmatpush2.msra.mxu0 0.0
    %284 = vmatprep.subr.mxu0 0.0
    %285 = vmatpush2.msra.mxu0 0.0
    %286 = vmatprep.mubr.f32.mxu0 0.0
    %287 = vmatmul.mubr.f32.gmra.mxu0 %v216
    %v288 = vpop.f32.mrf.mxu0
    %v289 = vadd.f32 0.0, %v288
    %v290 = vpop.f32.mrf.mxu0
    %291 = vdwg.mxu0
    %v294 = vcombine.high %v111, %v111
    %v296 = vunpack.c.l.s4 1983009808
    %v297 = vunpack.c.0.s8 %v296
    %v298 = vlaneseq
    %v299 = vshrl.u32 %v298, 7
    %v300 = vsub.s32 %v297, %v299
    %v301 = vrot.slane %v111, %v300
    %v303 = vunpack.c.l.s4 1983009808
    %v304 = vunpack.c.0.s8 %v303
    %v305 = vlaneseq
    %v306 = vshrl.u32 %v305, 7
    %v307 = vsub.s32 %v304, %v306
    %v308 = vrot.slane %v294, %v307
    %v309 = vcombine.high %v301, %v301
    %v310 = vcombine.high %v308, %v308
    %v311 = vcombine.high %v112, %v112
    %v313 = vunpack.c.l.s4 1983009808
    %v314 = vunpack.c.0.s8 %v313
    %v315 = vlaneseq
    %v316 = vshrl.u32 %v315, 7
    %v317 = vsub.s32 %v314, %v316
    %v318 = vrot.slane %v112, %v317
    %v320 = vunpack.c.l.s4 1983009808
    %v321 = vunpack.c.0.s8 %v320
    %v322 = vlaneseq
    %v323 = vshrl.u32 %v322, 7
    %v324 = vsub.s32 %v321, %v323
    %v325 = vrot.slane %v311, %v324
    %v326 = vcombine.high %v318, %v318
    %vm333 = vcmask 130048
    %v334 = vsel %vm333, %v325, 0
    %336 = vmatprep.subr.mxu0 0.0
    %337 = vmatpush1.msra.mxu0 %v128
    %338 = vmatprep.subr.mxu0 0.0
    %339 = vmatpush1.msra.mxu0 %v127
    %340 = vmatprep.subr.mxu0 0.0
    %341 = vmatpush1.msra.mxu0 %v126
    %342 = vmatprep.subr.mxu0 0.0
    %343 = vmatpush1.msra.mxu0 %v125
    %344 = vmatprep.subr.mxu0 0.0
    %345 = vmatpush1.msra.mxu0 %v124
    %346 = vmatprep.subr.mxu0 0.0
    %347 = vmatpush1.msra.mxu0 %v123
    %348 = vmatprep.subr.mxu0 0.0
    %349 = vmatpush1.msra.mxu0 %v122
    %350 = vmatprep.subr.mxu0 0.0
    %351 = vmatpush1.msra.mxu0 %v121
    %352 = vmatprep.subr.mxu0 0.0
    %353 = vmatpush1.msra.mxu0 %v120
    %354 = vmatprep.subr.mxu0 0.0
    %355 = vmatpush1.msra.mxu0 %v119
    %356 = vmatprep.subr.mxu0 0.0
    %357 = vmatpush1.msra.mxu0 %v118
    %358 = vmatprep.subr.mxu0 0.0
    %359 = vmatpush1.msra.mxu0 %v117
    %360 = vmatprep.subr.mxu0 0.0
    %361 = vmatpush1.msra.mxu0 %v116
    %362 = vmatprep.subr.mxu0 0.0
    %363 = vmatpush1.msra.mxu0 %v115
    %364 = vmatprep.subr.mxu0 0.0
    %365 = vmatpush1.msra.mxu0 %v114
    %366 = vmatprep.subr.mxu0 0.0
    %367 = vmatpush1.msra.mxu0 %v113
    %368 = vmatprep.subr.mxu0 0.0
    %369 = vmatpush2.msra.mxu0 %v144
    %370 = vmatprep.subr.mxu0 0.0
    %371 = vmatpush2.msra.mxu0 %v143
    %372 = vmatprep.subr.mxu0 0.0
    %373 = vmatpush2.msra.mxu0 %v142
    %374 = vmatprep.subr.mxu0 0.0
    %375 = vmatpush2.msra.mxu0 %v141
    %376 = vmatprep.subr.mxu0 0.0
    %377 = vmatpush2.msra.mxu0 %v140
    %378 = vmatprep.subr.mxu0 0.0
    %379 = vmatpush2.msra.mxu0 %v139
    %380 = vmatprep.subr.mxu0 0.0
    %381 = vmatpush2.msra.mxu0 %v138
    %382 = vmatprep.subr.mxu0 0.0
    %383 = vmatpush2.msra.mxu0 %v137
    %384 = vmatprep.subr.mxu0 0.0
    %385 = vmatpush2.msra.mxu0 %v136
    %386 = vmatprep.subr.mxu0 0.0
    %387 = vmatpush2.msra.mxu0 %v135
    %388 = vmatprep.subr.mxu0 0.0
    %389 = vmatpush2.msra.mxu0 %v134
    %390 = vmatprep.subr.mxu0 0.0
    %391 = vmatpush2.msra.mxu0 %v133
    %392 = vmatprep.subr.mxu0 0.0
    %393 = vmatpush2.msra.mxu0 %v132
    %394 = vmatprep.subr.mxu0 0.0
    %395 = vmatpush2.msra.mxu0 %v131
    %396 = vmatprep.subr.mxu0 0.0
    %397 = vmatpush2.msra.mxu0 %v130
    %398 = vmatprep.subr.mxu0 0.0
    %399 = vmatpush2.msra.mxu0 %v129
    %400 = vmatprep.mubr.f32.mxu0 %v309
    %401 = vmatmul.mubr.f32.gmra.mxu0 %v301
    %v402 = vpop.f32.mrf.mxu0
    %v403 = vadd.f32 %v289, %v402
    %v404 = vpop.f32.mrf.mxu0
    %405 = vdwg.mxu0
    %406 = vmatprep.subr.mxu0 0.0
    %407 = vmatpush1.msra.mxu0 %v160
    %408 = vmatprep.subr.mxu0 0.0
    %409 = vmatpush1.msra.mxu0 %v159
    %410 = vmatprep.subr.mxu0 0.0
    %411 = vmatpush1.msra.mxu0 %v158
    %412 = vmatprep.subr.mxu0 0.0
    %413 = vmatpush1.msra.mxu0 %v157
    %414 = vmatprep.subr.mxu0 0.0
    %415 = vmatpush1.msra.mxu0 %v156
    %416 = vmatprep.subr.mxu0 0.0
    %417 = vmatpush1.msra.mxu0 %v155
    %418 = vmatprep.subr.mxu0 0.0
    %419 = vmatpush1.msra.mxu0 %v154
    %420 = vmatprep.subr.mxu0 0.0
    %421 = vmatpush1.msra.mxu0 %v153
    %422 = vmatprep.subr.mxu0 0.0
    %423 = vmatpush1.msra.mxu0 %v152
    %424 = vmatprep.subr.mxu0 0.0
    %425 = vmatpush1.msra.mxu0 %v151
    %426 = vmatprep.subr.mxu0 0.0
    %427 = vmatpush1.msra.mxu0 %v150
    %428 = vmatprep.subr.mxu0 0.0
    %429 = vmatpush1.msra.mxu0 %v149
    %430 = vmatprep.subr.mxu0 0.0
    %431 = vmatpush1.msra.mxu0 %v148
    %432 = vmatprep.subr.mxu0 0.0
    %433 = vmatpush1.msra.mxu0 %v147
    %434 = vmatprep.subr.mxu0 0.0
    %435 = vmatpush1.msra.mxu0 %v146
    %436 = vmatprep.subr.mxu0 0.0
    %437 = vmatpush1.msra.mxu0 %v145
    %438 = vmatprep.subr.mxu0 0.0
    %439 = vmatpush2.msra.mxu0 %v176
    %440 = vmatprep.subr.mxu0 0.0
    %441 = vmatpush2.msra.mxu0 %v175
    %442 = vmatprep.subr.mxu0 0.0
    %443 = vmatpush2.msra.mxu0 %v174
    %444 = vmatprep.subr.mxu0 0.0
    %445 = vmatpush2.msra.mxu0 %v173
    %446 = vmatprep.subr.mxu0 0.0
    %447 = vmatpush2.msra.mxu0 %v172
    %448 = vmatprep.subr.mxu0 0.0
    %449 = vmatpush2.msra.mxu0 %v171
    %450 = vmatprep.subr.mxu0 0.0
    %451 = vmatpush2.msra.mxu0 %v170
    %452 = vmatprep.subr.mxu0 0.0
    %453 = vmatpush2.msra.mxu0 %v169
    %454 = vmatprep.subr.mxu0 0.0
    %455 = vmatpush2.msra.mxu0 %v168
    %456 = vmatprep.subr.mxu0 0.0
    %457 = vmatpush2.msra.mxu0 %v167
    %458 = vmatprep.subr.mxu0 0.0
    %459 = vmatpush2.msra.mxu0 %v166
    %460 = vmatprep.subr.mxu0 0.0
    %461 = vmatpush2.msra.mxu0 %v165
    %462 = vmatprep.subr.mxu0 0.0
    %463 = vmatpush2.msra.mxu0 %v164
    %464 = vmatprep.subr.mxu0 0.0
    %465 = vmatpush2.msra.mxu0 %v163
    %466 = vmatprep.subr.mxu0 0.0
    %467 = vmatpush2.msra.mxu0 %v162
    %468 = vmatprep.subr.mxu0 0.0
    %469 = vmatpush2.msra.mxu0 %v161
    %470 = vmatprep.mubr.f32.mxu0 %v310
    %471 = vmatmul.mubr.f32.gmra.mxu0 %v308
    %v472 = vpop.f32.mrf.mxu0
    %v473 = vadd.f32 %v403, %v472
    %v474 = vpop.f32.mrf.mxu0
    %475 = vdwg.mxu0
    %476 = vmatprep.subr.mxu0 0.0
    %477 = vmatpush1.msra.mxu0 %v192
    %478 = vmatprep.subr.mxu0 0.0
    %479 = vmatpush1.msra.mxu0 %v191
    %480 = vmatprep.subr.mxu0 0.0
    %481 = vmatpush1.msra.mxu0 %v190
    %482 = vmatprep.subr.mxu0 0.0
    %483 = vmatpush1.msra.mxu0 %v189
    %484 = vmatprep.subr.mxu0 0.0
    %485 = vmatpush1.msra.mxu0 %v188
    %486 = vmatprep.subr.mxu0 0.0
    %487 = vmatpush1.msra.mxu0 %v187
    %488 = vmatprep.subr.mxu0 0.0
    %489 = vmatpush1.msra.mxu0 %v186
    %490 = vmatprep.subr.mxu0 0.0
    %491 = vmatpush1.msra.mxu0 %v185
    %492 = vmatprep.subr.mxu0 0.0
    %493 = vmatpush1.msra.mxu0 %v184
    %494 = vmatprep.subr.mxu0 0.0
    %495 = vmatpush1.msra.mxu0 %v183
    %496 = vmatprep.subr.mxu0 0.0
    %497 = vmatpush1.msra.mxu0 %v182
    %498 = vmatprep.subr.mxu0 0.0
    %499 = vmatpush1.msra.mxu0 %v181
    %500 = vmatprep.subr.mxu0 0.0
    %501 = vmatpush1.msra.mxu0 %v180
    %502 = vmatprep.subr.mxu0 0.0
    %503 = vmatpush1.msra.mxu0 %v179
    %504 = vmatprep.subr.mxu0 0.0
    %505 = vmatpush1.msra.mxu0 %v178
    %506 = vmatprep.subr.mxu0 0.0
    %507 = vmatpush1.msra.mxu0 %v177
    %508 = vmatprep.subr.mxu0 0.0
    %509 = vmatpush2.msra.mxu0 %v208
    %510 = vmatprep.subr.mxu0 0.0
    %511 = vmatpush2.msra.mxu0 %v207
    %512 = vmatprep.subr.mxu0 0.0
    %513 = vmatpush2.msra.mxu0 %v206
    %514 = vmatprep.subr.mxu0 0.0
    %515 = vmatpush2.msra.mxu0 %v205
    %516 = vmatprep.subr.mxu0 0.0
    %517 = vmatpush2.msra.mxu0 %v204
    %518 = vmatprep.subr.mxu0 0.0
    %519 = vmatpush2.msra.mxu0 %v203
    %520 = vmatprep.subr.mxu0 0.0
    %521 = vmatpush2.msra.mxu0 %v202
    %522 = vmatprep.subr.mxu0 0.0
    %523 = vmatpush2.msra.mxu0 %v201
    %524 = vmatprep.subr.mxu0 0.0
    %525 = vmatpush2.msra.mxu0 %v200
    %526 = vmatprep.subr.mxu0 0.0
    %527 = vmatpush2.msra.mxu0 %v199
    %528 = vmatprep.subr.mxu0 0.0
    %529 = vmatpush2.msra.mxu0 %v198
    %530 = vmatprep.subr.mxu0 0.0
    %531 = vmatpush2.msra.mxu0 %v197
    %532 = vmatprep.subr.mxu0 0.0
    %533 = vmatpush2.msra.mxu0 %v196
    %534 = vmatprep.subr.mxu0 0.0
    %535 = vmatpush2.msra.mxu0 %v195
    %536 = vmatprep.subr.mxu0 0.0
    %537 = vmatpush2.msra.mxu0 %v194
    %538 = vmatprep.subr.mxu0 0.0
    %539 = vmatpush2.msra.mxu0 %v193
    %540 = vmatprep.mubr.f32.mxu0 %v326
    %541 = vmatmul.mubr.f32.gmra.mxu0 %v318
    %v542 = vpop.f32.mrf.mxu0
    %v543 = vadd.f32 %v473, %v542
    %v544 = vpop.f32.mrf.mxu0
    %545 = vdwg.mxu0
    %546 = vmatprep.subr.mxu0 0.0
    %547 = vmatpush1.msra.mxu0 0.0
    %548 = vmatprep.subr.mxu0 0.0
    %549 = vmatpush1.msra.mxu0 0.0
    %550 = vmatprep.subr.mxu0 0.0
    %551 = vmatpush1.msra.mxu0 0.0
    %552 = vmatprep.subr.mxu0 0.0
    %553 = vmatpush1.msra.mxu0 0.0
    %554 = vmatprep.subr.mxu0 0.0
    %555 = vmatpush1.msra.mxu0 0.0
    %556 = vmatprep.subr.mxu0 0.0
    %557 = vmatpush1.msra.mxu0 0.0
    %558 = vmatprep.subr.mxu0 0.0
    %559 = vmatpush1.msra.mxu0 0.0
    %560 = vmatprep.subr.mxu0 0.0
    %561 = vmatpush1.msra.mxu0 0.0
    %562 = vmatprep.subr.mxu0 0.0
    %563 = vmatpush1.msra.mxu0 0.0
    %564 = vmatprep.subr.mxu0 0.0
    %565 = vmatpush1.msra.mxu0 0.0
    %566 = vmatprep.subr.mxu0 0.0
    %567 = vmatpush1.msra.mxu0 0.0
    %568 = vmatprep.subr.mxu0 0.0
    %569 = vmatpush1.msra.mxu0 0.0
    %570 = vmatprep.subr.mxu0 0.0
    %571 = vmatpush1.msra.mxu0 0.0
    %572 = vmatprep.subr.mxu0 0.0
    %573 = vmatpush1.msra.mxu0 0.0
    %574 = vmatprep.subr.mxu0 0.0
    %575 = vmatpush1.msra.mxu0 %v210
    %576 = vmatprep.subr.mxu0 0.0
    %577 = vmatpush1.msra.mxu0 %v209
    %578 = vmatprep.subr.mxu0 0.0
    %579 = vmatpush2.msra.mxu0 0.0
    %580 = vmatprep.subr.mxu0 0.0
    %581 = vmatpush2.msra.mxu0 0.0
    %582 = vmatprep.subr.mxu0 0.0
    %583 = vmatpush2.msra.mxu0 0.0
    %584 = vmatprep.subr.mxu0 0.0
    %585 = vmatpush2.msra.mxu0 0.0
    %586 = vmatprep.subr.mxu0 0.0
    %587 = vmatpush2.msra.mxu0 0.0
    %588 = vmatprep.subr.mxu0 0.0
    %589 = vmatpush2.msra.mxu0 0.0
    %590 = vmatprep.subr.mxu0 0.0
    %591 = vmatpush2.msra.mxu0 0.0
    %592 = vmatprep.subr.mxu0 0.0
    %593 = vmatpush2.msra.mxu0 0.0
    %594 = vmatprep.subr.mxu0 0.0
    %595 = vmatpush2.msra.mxu0 0.0
    %596 = vmatprep.subr.mxu0 0.0
    %597 = vmatpush2.msra.mxu0 0.0
    %598 = vmatprep.subr.mxu0 0.0
    %599 = vmatpush2.msra.mxu0 0.0
    %600 = vmatprep.subr.mxu0 0.0
    %601 = vmatpush2.msra.mxu0 0.0
    %602 = vmatprep.subr.mxu0 0.0
    %603 = vmatpush2.msra.mxu0 0.0
    %604 = vmatprep.subr.mxu0 0.0
    %605 = vmatpush2.msra.mxu0 0.0
    %606 = vmatprep.subr.mxu0 0.0
    %607 = vmatpush2.msra.mxu0 0.0
    %608 = vmatprep.subr.mxu0 0.0
    %609 = vmatpush2.msra.mxu0 0.0
    %610 = vmatprep.mubr.f32.mxu0 0.0
    %611 = vmatmul.mubr.f32.gmra.mxu0 %v334
    %v612 = vpop.f32.mrf.mxu0
    %v613 = vadd.f32 %v543, %v612
    %v614 = vpop.f32.mrf.mxu0
    %615 = vdwg.mxu0
    %v616 = vld [vmem:[%s4] sm:$0x1]
    %v618 = vlaneseq
    %v619 = vshrl.u32 %v618, 7
    %v620 = vsub.s32 0, %v619
    %v621 = vrot.slane %v616, %v620
    %v623 = vadd.f32 %v613, %v621
    %v624 = vmax.f32 %v623, 0.0
    %v625 = vld [vmem:[#allocation10] sm:$0xff]
    %v626 = vld [vmem:[#allocation10 + $0x8] sm:$0xff]
    %v627 = vld [vmem:[#allocation10 + $0x10] sm:$0xff]
    %v628 = vld [vmem:[#allocation10 + $0x18] sm:$0xff]
    %v629 = vld [vmem:[#allocation10 + $0x20] sm:$0xff]
    %v630 = vld [vmem:[#allocation10 + $0x28] sm:$0xff]
    %v631 = vld [vmem:[#allocation10 + $0x30] sm:$0xff]
    %v632 = vld [vmem:[#allocation10 + $0x38] sm:$0xff]
    %v633 = vld [vmem:[#allocation10 + $0x40] sm:$0xff]
    %v634 = vld [vmem:[#allocation10 + $0x48] sm:$0xff]
    %v635 = vld [vmem:[#allocation10 + $0x50] sm:$0xff]
    %v636 = vld [vmem:[#allocation10 + $0x58] sm:$0xff]
    %v637 = vld [vmem:[#allocation10 + $0x60] sm:$0xff]
    %v638 = vld [vmem:[#allocation10 + $0x68] sm:$0xff]
    %v639 = vld [vmem:[#allocation10 + $0x70] sm:$0xff]
    %v640 = vld [vmem:[#allocation10 + $0x78] sm:$0xff]
    %v641 = vld [vmem:[%s6] sm:$0x1]
    %v643 = vlaneseq
    %v644 = vshrl.u32 %v643, 7
    %v645 = vsub.s32 0, %v644
    %v646 = vrot.slane %v641, %v645
    %648 = vmatprep.subr.mxu0 0.0
    %649 = vmatpush1.msra.mxu0 %v640
    %650 = vmatprep.subr.mxu0 0.0
    %651 = vmatpush1.msra.mxu0 %v639
    %652 = vmatprep.subr.mxu0 0.0
    %653 = vmatpush1.msra.mxu0 %v638
    %654 = vmatprep.subr.mxu0 0.0
    %655 = vmatpush1.msra.mxu0 %v637
    %656 = vmatprep.subr.mxu0 0.0
    %657 = vmatpush1.msra.mxu0 %v636
    %658 = vmatprep.subr.mxu0 0.0
    %659 = vmatpush1.msra.mxu0 %v635
    %660 = vmatprep.subr.mxu0 0.0
    %661 = vmatpush1.msra.mxu0 %v634
    %662 = vmatprep.subr.mxu0 0.0
    %663 = vmatpush1.msra.mxu0 %v633
    %664 = vmatprep.subr.mxu0 0.0
    %665 = vmatpush1.msra.mxu0 %v632
    %666 = vmatprep.subr.mxu0 0.0
    %667 = vmatpush1.msra.mxu0 %v631
    %668 = vmatprep.subr.mxu0 0.0
    %669 = vmatpush1.msra.mxu0 %v630
    %670 = vmatprep.subr.mxu0 0.0
    %671 = vmatpush1.msra.mxu0 %v629
    %672 = vmatprep.subr.mxu0 0.0
    %673 = vmatpush1.msra.mxu0 %v628
    %674 = vmatprep.subr.mxu0 0.0
    %675 = vmatpush1.msra.mxu0 %v627
    %676 = vmatprep.subr.mxu0 0.0
    %677 = vmatpush1.msra.mxu0 %v626
    %678 = vmatprep.subr.mxu0 0.0
    %679 = vmatpush1.msra.mxu0 %v625
    %680 = vmatprep.subr.mxu0 0.0
    %681 = vmatpush2.msra.mxu0 0.0
    %682 = vmatprep.subr.mxu0 0.0
    %683 = vmatpush2.msra.mxu0 0.0
    %684 = vmatprep.subr.mxu0 0.0
    %685 = vmatpush2.msra.mxu0 0.0
    %686 = vmatprep.subr.mxu0 0.0
    %687 = vmatpush2.msra.mxu0 0.0
    %688 = vmatprep.subr.mxu0 0.0
    %689 = vmatpush2.msra.mxu0 0.0
    %690 = vmatprep.subr.mxu0 0.0
    %691 = vmatpush2.msra.mxu0 0.0
    %692 = vmatprep.subr.mxu0 0.0
    %693 = vmatpush2.msra.mxu0 0.0
    %694 = vmatprep.subr.mxu0 0.0
    %695 = vmatpush2.msra.mxu0 0.0
    %696 = vmatprep.subr.mxu0 0.0
    %697 = vmatpush2.msra.mxu0 0.0
    %698 = vmatprep.subr.mxu0 0.0
    %699 = vmatpush2.msra.mxu0 0.0
    %700 = vmatprep.subr.mxu0 0.0
    %701 = vmatpush2.msra.mxu0 0.0
    %702 = vmatprep.subr.mxu0 0.0
    %703 = vmatpush2.msra.mxu0 0.0
    %704 = vmatprep.subr.mxu0 0.0
    %705 = vmatpush2.msra.mxu0 0.0
    %706 = vmatprep.subr.mxu0 0.0
    %707 = vmatpush2.msra.mxu0 0.0
    %708 = vmatprep.subr.mxu0 0.0
    %709 = vmatpush2.msra.mxu0 0.0
    %710 = vmatprep.subr.mxu0 0.0
    %711 = vmatpush2.msra.mxu0 0.0
    %712 = vmatprep.mubr.f32.mxu0 0.0
    %713 = vmatmul.mubr.f32.gmra.mxu0 %v624
    %v714 = vpop.f32.mrf.mxu0
    %v715 = vadd.f32 %v646, %v714
    %v716 = vpop.f32.mrf.mxu0
    %717 = vdwg.mxu0
    %v718 = vmax.f32 %v715, 0.0
    %v719 = vld [vmem:[#allocation11] sm:$0xff]
    %v720 = vld [vmem:[#allocation11 + $0x8] sm:$0xff]
    %v721 = vld [vmem:[#allocation11 + $0x10] sm:$0xff]
    %v722 = vld [vmem:[#allocation11 + $0x18] sm:$0xff]
    %v723 = vld [vmem:[#allocation11 + $0x20] sm:$0xff]
    %v724 = vld [vmem:[#allocation11 + $0x28] sm:$0xff]
    %v725 = vld [vmem:[#allocation11 + $0x30] sm:$0xff]
    %v726 = vld [vmem:[#allocation11 + $0x38] sm:$0xff]
    %v727 = vld [vmem:[#allocation11 + $0x40] sm:$0xff]
    %v728 = vld [vmem:[#allocation11 + $0x48] sm:$0xff]
    %v729 = vld [vmem:[#allocation11 + $0x50] sm:$0xff]
    %v730 = vld [vmem:[#allocation11 + $0x58] sm:$0xff]
    %v731 = vld [vmem:[#allocation11 + $0x60] sm:$0xff]
    %v732 = vld [vmem:[#allocation11 + $0x68] sm:$0xff]
    %v733 = vld [vmem:[#allocation11 + $0x70] sm:$0xff]
    %v734 = vld [vmem:[#allocation11 + $0x78] sm:$0xff]
    %v735 = vld [vmem:[%s8] sm:$0x1]
    %v737 = vlaneseq
    %v738 = vshrl.u32 %v737, 7
    %v739 = vsub.s32 0, %v738
    %v740 = vrot.slane %v735, %v739
    %742 = vmatprep.subr.mxu0 0.0
    %743 = vmatpush1.msra.mxu0 %v734
    %744 = vmatprep.subr.mxu0 0.0
    %745 = vmatpush1.msra.mxu0 %v733
    %746 = vmatprep.subr.mxu0 0.0
    %747 = vmatpush1.msra.mxu0 %v732
    %748 = vmatprep.subr.mxu0 0.0
    %749 = vmatpush1.msra.mxu0 %v731
    %750 = vmatprep.subr.mxu0 0.0
    %751 = vmatpush1.msra.mxu0 %v730
    %752 = vmatprep.subr.mxu0 0.0
    %753 = vmatpush1.msra.mxu0 %v729
    %754 = vmatprep.subr.mxu0 0.0
    %755 = vmatpush1.msra.mxu0 %v728
    %756 = vmatprep.subr.mxu0 0.0
    %757 = vmatpush1.msra.mxu0 %v727
    %758 = vmatprep.subr.mxu0 0.0
    %759 = vmatpush1.msra.mxu0 %v726
    %760 = vmatprep.subr.mxu0 0.0
    %761 = vmatpush1.msra.mxu0 %v725
    %762 = vmatprep.subr.mxu0 0.0
    %763 = vmatpush1.msra.mxu0 %v724
    %764 = vmatprep.subr.mxu0 0.0
    %765 = vmatpush1.msra.mxu0 %v723
    %766 = vmatprep.subr.mxu0 0.0
    %767 = vmatpush1.msra.mxu0 %v722
    %768 = vmatprep.subr.mxu0 0.0
    %769 = vmatpush1.msra.mxu0 %v721
    %770 = vmatprep.subr.mxu0 0.0
    %771 = vmatpush1.msra.mxu0 %v720
    %772 = vmatprep.subr.mxu0 0.0
    %773 = vmatpush1.msra.mxu0 %v719
    %774 = vmatprep.subr.mxu0 0.0
    %775 = vmatpush2.msra.mxu0 0.0
    %776 = vmatprep.subr.mxu0 0.0
    %777 = vmatpush2.msra.mxu0 0.0
    %778 = vmatprep.subr.mxu0 0.0
    %779 = vmatpush2.msra.mxu0 0.0
    %780 = vmatprep.subr.mxu0 0.0
    %781 = vmatpush2.msra.mxu0 0.0
    %782 = vmatprep.subr.mxu0 0.0
    %783 = vmatpush2.msra.mxu0 0.0
    %784 = vmatprep.subr.mxu0 0.0
    %785 = vmatpush2.msra.mxu0 0.0
    %786 = vmatprep.subr.mxu0 0.0
    %787 = vmatpush2.msra.mxu0 0.0
    %788 = vmatprep.subr.mxu0 0.0
    %789 = vmatpush2.msra.mxu0 0.0
    %790 = vmatprep.subr.mxu0 0.0
    %791 = vmatpush2.msra.mxu0 0.0
    %792 = vmatprep.subr.mxu0 0.0
    %793 = vmatpush2.msra.mxu0 0.0
    %794 = vmatprep.subr.mxu0 0.0
    %795 = vmatpush2.msra.mxu0 0.0
    %796 = vmatprep.subr.mxu0 0.0
    %797 = vmatpush2.msra.mxu0 0.0
    %798 = vmatprep.subr.mxu0 0.0
    %799 = vmatpush2.msra.mxu0 0.0
    %800 = vmatprep.subr.mxu0 0.0
    %801 = vmatpush2.msra.mxu0 0.0
    %802 = vmatprep.subr.mxu0 0.0
    %803 = vmatpush2.msra.mxu0 0.0
    %804 = vmatprep.subr.mxu0 0.0
    %805 = vmatpush2.msra.mxu0 0.0
    %806 = vmatprep.mubr.f32.mxu0 0.0
    %807 = vmatmul.mubr.f32.gmra.mxu0 %v718
    %v808 = vpop.f32.mrf.mxu0
    %v809 = vadd.f32 %v740, %v808
    %v810 = vpop.f32.mrf.mxu0
    %811 = vdwg.mxu0
    %v812 = vlaneseq
    %v813 = vand.u32 %v812, 127
    %vm814 = vcmp.ge.s32.totalorder %v813, 5
    %vm815 = vcmp.lt.s32.totalorder %v813, 10
    %vm816 = vmand %vm814, %vm815
    %v817 = vmul.f32 %v809, 1.442695
    %v818 = vpow.pop %v817
    %v819 = vsel %vm816, %v818, %v809
    %820 = vst [vmem:[#allocation13] sm:$0x3] %v819
    // Predicated region
    $region62: #{tpu_custom_call.1} parent=1 // pred_check
      _
    $region63: #{tpu_custom_call.1} parent=1 // pred_check_branch
      %822 = sbr.rel (0) target = $region65
    $region64: #{tpu_custom_call.1} parent=1 // pred_region
      %s824 = ssub.s32 32, 32
      %825 = vsyncadd [#allocation4], %s824
      %s827 = sshll.u32 [#allocation13], 4
      %s828 = int_to_ptr.vmem [resolvable:$true] %s827
      %830 = dma.vmem_to_hbm [thread:$0]  %s828, 32, %s9, [#allocation4]
    $region65: #{tpu_custom_call.1} parent=1 // pred_fallthru
      _
    // Predicated region
    $region66: #{tpu_custom_call.1} parent=1 // pred_check
      _
    $region67: #{tpu_custom_call.1} parent=1 // pred_check_branch
      %832 = sbr.rel (0) target = $region69
    $region68: #{tpu_custom_call.1} parent=1 // pred_region
      %833 = dma.done [#allocation4], 32
    $region69: #{tpu_custom_call.1} parent=1 // pred_fallthru
      _
    %834 = vsyncpa [#allocation3], 1
    %835 = vsyncpa [#allocation6], 1
    %836 = vsyncpa [#allocation9], 1
    %837 = vsyncpa [#allocation12], 1
    %838 = vsyncpa [#allocation4], 1

</llo_original>
